<compile_context>
chip_gen: v7x
topology: tpu7x:2x2x1
jax: 0.10.0
libtpu: 0.0.40
codegen_flags: <defaults>
</compile_context>

<pallas_src>
import functools
import math

import jax
import jax.numpy as jnp
from jax import lax
from jax.experimental import pallas as pl
from jax.experimental.pallas import tpu as pltpu


def _sum_all(v):
    # full reduction kept as (1, 1) via staged keepdims reductions
    return jnp.sum(jnp.sum(v, axis=1, keepdims=True), axis=0, keepdims=True)


# ----------------------------------------------------------------------------
# Fused kernel: scale -> label-prop pass 1 (P1 @ x) -> pass 2 (log(P2 @ y))
# ----------------------------------------------------------------------------
def _fused_kernel(x_ref, prec_ref, lab_ref, o_ref, *, support_size,
                  n_squarings, n_refine):
    n, c = x_ref.shape
    _, nc = o_ref.shape
    inv_sqrt_c = 1.0 / math.sqrt(c)

    # ---- step 1: x * sigmoid(1 + precision) --------------------------------
    p = prec_ref[...]                                        # (1, c) broadcasts
    x = x_ref[...].astype(jnp.float32) * (1.0 / (1.0 + jnp.exp(-(1.0 + p))))

    # ---- step 2: one_hot(labels), query rows zeroed -------------------------
    lab = lab_ref[...]                                       # (n, 1) int32
    row_n1 = lax.broadcasted_iota(jnp.int32, (n, 1), 0)
    cls_iota = lax.broadcasted_iota(jnp.int32, (n, nc), 1)
    y = jnp.where((cls_iota == lab) & (row_n1 < support_size), 1.0, 0.0)

    # boolean diagonal mask (no persistent f32 eye / off_diag (n,n) buffers)
    row_ids = lax.broadcasted_iota(jnp.int32, (n, n), 0)
    col_ids = lax.broadcasted_iota(jnp.int32, (n, n), 1)
    is_diag = row_ids == col_ids

    def propagate(xi, rhs):
        # standarized_label_prop(standarize='all', kernel='rbf',
        #                        gaussian_scale=1, alpha=1) applied to rhs.
        # pairwise sq. distance / sqrt(c) via a Gram matmul (no x.T transpose)
        g = lax.dot_general(xi, xi, (((1,), (1,)), ((), ())),
                            preferred_element_type=jnp.float32)     # (n, n)
        rn_col = jnp.sum(xi * xi, axis=1, keepdims=True)            # (n, 1)
        # row-oriented copy of the same norms == diag(g); at n=16 this masked
        # sublane reduce is as cheap as a (n,1)->(1,n) transpose relayout.
        rn_row = jnp.sum(jnp.where(is_diag, g, 0.0), axis=0, keepdims=True)
        sq = (rn_col + rn_row - 2.0 * g) * inv_sqrt_c
        sq = jnp.where(is_diag, 0.0, jnp.maximum(sq, 0.0))          # diag == 0

        # standarize='all': divide by unbiased std over nonzero entries.
        # Single fused stats pass (sq*mask == sq, so plain sums suffice).
        mask = (sq != 0.0).astype(jnp.float32)
        cnt = _sum_all(mask)
        s1 = _sum_all(sq)
        s2 = _sum_all(sq * sq)
        var = (s2 - s1 * s1 / cnt) / (cnt - 1.0)
        sq = sq * lax.rsqrt(var)

        # rbf kernel, zero diagonal.  W is symmetric, so one row-sum reduce is
        # enough: iterate with the similar row-normalized A = 0.5 * D^-1 * W
        # instead of Sh = 0.5 * D^-1/2 W D^-1/2 (drops the axis=0 reduce):
        #   P @ rhs = 0.5*(I - Sh)^-1 rhs = 0.5*sqrt(D) (I - A)^-1 (D^-1/2 rhs)
        w = jnp.where(is_diag, 0.0, jnp.exp(-sq))
        d = 1e-4 + jnp.sum(w, axis=1, keepdims=True)                # (n, 1)
        isq = lax.rsqrt(d)                                          # D^{-1/2}
        A = (0.5 * (isq * isq)) * w                                 # 0.5 * D^-1 W
        sqrt_d = d * isq                                            # D^{+1/2}

        # (I - A)^-1 rhs0 via Neumann sum with repeated squaring:
        #   z_k = prod_{i<k} (I + A^{2^i}) rhs0 = sum_{j<2^k} A^j rhs0
        # bf16 MXU operands (single-pass vmatmul), f32 accumulation; rho(A)<0.5
        # so 31 terms give <1e-8 truncation.  One final f32 Richardson step
        # contracts the accumulated bf16 rounding error by rho(A) < 0.5.
        rhs0 = rhs * isq
        z = rhs0
        B = A
        for i in range(n_squarings):
            Bb = B.astype(jnp.bfloat16)
            z = z + jnp.dot(Bb, z.astype(jnp.bfloat16),
                            preferred_element_type=jnp.float32)
            if i + 1 < n_squarings:
                B = jnp.dot(Bb, Bb, preferred_element_type=jnp.float32)
        for _ in range(n_refine):                                   # f32 polish
            z = rhs0 + jnp.dot(A, z, preferred_element_type=jnp.float32)
        return (0.5 * sqrt_d) * z

    xprop = propagate(x, x)        # pass 1: only the propagated embeddings
    logits = propagate(xprop, y)   # pass 2: only the propagated labels
    o_ref[...] = jnp.log(logits[support_size:, :] + 1e-6)


def adaptive_ten_forward(x2d, prec2d, labels2d, *, support_size, query_size,
                         nclasses, n_squarings=5, n_refine=1):
    n, c = x2d.shape
    kernel = functools.partial(_fused_kernel, support_size=support_size,
                               n_squarings=n_squarings, n_refine=n_refine)
    # NOTE: b == 1 here.  If episodes were ever batched (b > 1), the batch
    # would become a leading grid axis marked "parallel" so the launch /
    # per-step overhead amortizes and v7x's two TensorCores both get work.
    return pl.pallas_call(
        kernel,
        out_shape=jax.ShapeDtypeStruct((query_size, nclasses), jnp.float32),
        grid=(1,),
        in_specs=[pl.BlockSpec((n, c), lambda i: (0, 0)),
                  pl.BlockSpec((1, c), lambda i: (0, 0)),
                  pl.BlockSpec((n, 1), lambda i: (0, 0))],
        out_specs=pl.BlockSpec((query_size, nclasses), lambda i: (0, 0)),
        compiler_params=pltpu.CompilerParams(
            dimension_semantics=("arbitrary",),
            # body keeps a handful of (n,n) f32 temporaries (g, sq, w, A, ...);
            # trivial at n=16 but quadratic in n — explicit cap keeps headroom
            # visible if episode size scales (v7x: 64 MiB physical VMEM).
            vmem_limit_bytes=32 * 1024 * 1024),
    )(x2d, prec2d, labels2d)


# ----------------------------------------------------------------------------
# Module wrapper (parameters initialized deterministically in-script)
# ----------------------------------------------------------------------------
class AdaptiveTenInnerPallas:
    def __init__(self, output_size, nclasses, key):
        kp, kw, kb = jax.random.split(key, 3)
        self.nclasses = nclasses
        self.output_size = output_size
        self.precision = jax.random.normal(kp, (1, 1, output_size), jnp.float32) * 0.1
        # classifier params exist in __init__ but are unused by the inference forward
        lim = 1.0 / math.sqrt(output_size)
        self.cls_w = jax.random.uniform(kw, (nclasses, output_size), jnp.float32, -lim, lim)
        self.cls_b = jax.random.uniform(kb, (nclasses,), jnp.float32, -lim, lim)

    def forward(self, x, support_size, query_size, labels):
        # TODO(synk): the in-forward LBFGS optimizer.step() (train_step) performs
        # gradient-based parameter optimization and has no Pallas equivalent; we
        # run the no_grad inference path with the deterministically init'd precision.
        b, k, c = x.shape
        assert b == 1 and k == support_size + query_size
        labels2d = labels.reshape(-1, 1).astype(jnp.int32)
        return adaptive_ten_forward(x[0], self.precision[0], labels2d,
                                    support_size=support_size,
                                    query_size=query_size,
                                    nclasses=self.nclasses)


# ----------------------------------------------------------------------------
# Pure-JAX reference (for verification) — exact inverse, direct diff^2
# ----------------------------------------------------------------------------
def _ref_label_prop(x, labels):
    n, c = x.shape
    diff = x[:, None, :] - x[None, :, :]
    sq = jnp.sum(diff ** 2, axis=-1) / math.sqrt(c)
    mf = (sq != 0.0).astype(jnp.float32)
    cnt = mf.sum()
    mean = (sq * mf).sum() / cnt
    var = (((sq - mean) ** 2) * mf).sum() / (cnt - 1.0)
    sq = sq / jnp.sqrt(var)
    w = jnp.exp(-sq) * (1.0 - jnp.eye(n, dtype=jnp.float32))
    isq = 1.0 / jnp.sqrt(1e-4 + w.sum(axis=1))
    S = w * isq[None, :] * isq[:, None]
    P = jnp.linalg.inv(jnp.eye(n, dtype=jnp.float32) - 0.5 * S) * 0.5
    return jnp.log(P @ labels + 1e-6), P @ x


def _ref_forward(precision, x, support_size, query_size, labels, nclasses):
    x2d = x[0] * (1.0 / (1.0 + jnp.exp(-(1.0 + precision[0]))))
    one_hot = jax.nn.one_hot(labels.reshape(-1), nclasses, dtype=jnp.float32)
    one_hot = one_hot.at[support_size:, :].set(0.0)
    _, xprop = _ref_label_prop(x2d, one_hot)
    logits, _ = _ref_label_prop(xprop, one_hot)
    return logits[support_size:]


if __name__ == "__main__":
    key = jax.random.PRNGKey(0)
    k_mod, k_x, k_lab = jax.random.split(key, 3)

    support_size, query_size = 8, 8
    n = support_size + query_size
    c = 32          # output_size (feature dim)
    nclasses = 4

    model = AdaptiveTenInnerPallas(c, nclasses, k_mod)
    x = jax.random.normal(k_x, (1, n, c), jnp.float32)
    # make sure every class id appears (matches F.one_hot's inferred width)
    labels = jnp.concatenate(
        [jnp.arange(nclasses, dtype=jnp.int32),
         jax.random.randint(k_lab, (n - nclasses,), 0, nclasses, dtype=jnp.int32)])

    out = model.forward(x, support_size, query_size, labels)
    out = jax.block_until_ready(out)

    ref = _ref_forward(model.precision, x, support_size, query_size, labels, nclasses)
    assert out.shape == (query_size, nclasses)
    assert bool(jnp.all(jnp.isfinite(out)))
    assert bool(jnp.allclose(out, ref, atol=1e-2, rtol=1e-2)), (out, ref)
    print("KERNEL_OK")
</pallas_src>

<mosaic_0001>
module attributes {stable_mosaic.version = 11 : i64} {
  func.func @_fused_kernel(%arg0: i32, %arg1: memref<16x32xf32, #tpu.memory_space<vmem>>, %arg2: memref<1x32xf32, #tpu.memory_space<vmem>>, %arg3: memref<16x1xi32, #tpu.memory_space<vmem>>, %arg4: memref<8x4xf32, #tpu.memory_space<vmem>>) attributes {dimension_semantics = [#tpu.dimension_semantics<arbitrary>], iteration_bounds = array<i64: 1>, scalar_prefetch = 0 : i64, scratch_operands = 0 : i64, tpu.core_type = #tpu.core_type<tc>, window_params = [{pipeline_mode = #tpu.pipeline_mode<synchronous>, transform_indices = @transform_0, window_bounds = array<i64: 16, 32>}, {pipeline_mode = #tpu.pipeline_mode<synchronous>, transform_indices = @transform_1, window_bounds = array<i64: 1, 32>}, {pipeline_mode = #tpu.pipeline_mode<synchronous>, transform_indices = @transform_2, window_bounds = array<i64: 16, 1>}, {pipeline_mode = #tpu.pipeline_mode<synchronous>, transform_indices = @transform_3, window_bounds = array<i64: 8, 4>}]} {
    %c0 = arith.constant 0 : index
    %c0_0 = arith.constant 0 : index
    %0 = vector.load %arg2[%c0, %c0_0] : memref<1x32xf32, #tpu.memory_space<vmem>>, vector<1x32xf32>
    %c0_1 = arith.constant 0 : index
    %c0_2 = arith.constant 0 : index
    %1 = vector.load %arg1[%c0_1, %c0_2] : memref<16x32xf32, #tpu.memory_space<vmem>>, vector<16x32xf32>
    %cst = arith.constant 1.000000e+00 : f32
    %2 = vector.broadcast %cst : f32 to vector<1x32xf32>
    %3 = arith.addf %2, %0 : vector<1x32xf32>
    %cst_3 = arith.constant 0.000000e+00 : f32
    %4 = vector.broadcast %cst_3 : f32 to vector<1x32xf32>
    %5 = arith.subf %4, %3 : vector<1x32xf32>
    %6 = math.exp %5 : vector<1x32xf32>
    %cst_4 = arith.constant 1.000000e+00 : f32
    %7 = vector.broadcast %cst_4 : f32 to vector<1x32xf32>
    %8 = arith.addf %7, %6 : vector<1x32xf32>
    %cst_5 = arith.constant 1.000000e+00 : f32
    %9 = vector.broadcast %cst_5 : f32 to vector<1x32xf32>
    %10 = arith.divf %9, %8 : vector<1x32xf32>
    %11 = vector.broadcast %10 : vector<1x32xf32> to vector<16x32xf32>
    %12 = arith.mulf %1, %11 : vector<16x32xf32>
    %c0_6 = arith.constant 0 : index
    %c0_7 = arith.constant 0 : index
    %13 = vector.load %arg3[%c0_6, %c0_7] : memref<16x1xi32, #tpu.memory_space<vmem>>, vector<16x1xi32>
    %14 = tpu.iota {dimensions = array<i32: 0>} : vector<16x1xi32>
    %15 = tpu.iota {dimensions = array<i32: 1>} : vector<16x4xi32>
    %16 = vector.broadcast %13 : vector<16x1xi32> to vector<16x4xi32>
    %17 = arith.cmpi eq, %15, %16 : vector<16x4xi32>
    %c8_i32 = arith.constant 8 : i32
    %18 = vector.broadcast %c8_i32 : i32 to vector<16x1xi32>
    %19 = arith.cmpi slt, %14, %18 : vector<16x1xi32>
    %20 = vector.broadcast %19 : vector<16x1xi1> to vector<16x4xi1>
    %21 = arith.andi %17, %20 : vector<16x4xi1>
    %cst_8 = arith.constant 1.000000e+00 : f32
    %cst_9 = arith.constant 0.000000e+00 : f32
    %22 = vector.broadcast %cst_8 : f32 to vector<16x4xf32>
    %23 = vector.broadcast %cst_9 : f32 to vector<16x4xf32>
    %24 = arith.select %21, %22, %23 : vector<16x4xi1>, vector<16x4xf32>
    %25 = tpu.iota {dimensions = array<i32: 0>} : vector<16x16xi32>
    %26 = tpu.iota {dimensions = array<i32: 1>} : vector<16x16xi32>
    %27 = arith.cmpi eq, %25, %26 : vector<16x16xi32>
    %cst_10 = arith.constant dense<0.000000e+00> : vector<16x16xf32>
    %28 = tpu.matmul %12, %12, %cst_10 {dimension_numbers = #tpu.dot_dimension_numbers<[1], [1], [0], [0], [0, 0, 1, 0], [], []>} : vector<16x32xf32>, vector<16x32xf32>, vector<16x16xf32> -> vector<16x16xf32>
    %29 = arith.mulf %12, %12 : vector<16x32xf32>
    %cst_11 = arith.constant dense<0.000000e+00> : vector<16xf32>
    %30 = vector.multi_reduction <add>, %29, %cst_11 [1] : vector<16x32xf32> to vector<16xf32>
    %31 = vector.shape_cast %30 : vector<16xf32> to vector<16x1xf32>
    %cst_12 = arith.constant 0.000000e+00 : f32
    %32 = vector.broadcast %cst_12 : f32 to vector<16x16xf32>
    %33 = arith.select %27, %28, %32 : vector<16x16xi1>, vector<16x16xf32>
    %cst_13 = arith.constant dense<0.000000e+00> : vector<16xf32>
    %34 = vector.multi_reduction <add>, %33, %cst_13 [0] : vector<16x16xf32> to vector<16xf32>
    %35 = vector.shape_cast %34 : vector<16xf32> to vector<1x16xf32>
    %36 = vector.broadcast %31 : vector<16x1xf32> to vector<16x16xf32>
    %37 = vector.broadcast %35 : vector<1x16xf32> to vector<16x16xf32>
    %38 = arith.addf %36, %37 : vector<16x16xf32>
    %cst_14 = arith.constant 2.000000e+00 : f32
    %39 = vector.broadcast %cst_14 : f32 to vector<16x16xf32>
    %40 = arith.mulf %39, %28 : vector<16x16xf32>
    %41 = arith.subf %38, %40 : vector<16x16xf32>
    %cst_15 = arith.constant 0.176776692 : f32
    %42 = vector.broadcast %cst_15 : f32 to vector<16x16xf32>
    %43 = arith.mulf %41, %42 : vector<16x16xf32>
    %cst_16 = arith.constant 0.000000e+00 : f32
    %44 = vector.broadcast %cst_16 : f32 to vector<16x16xf32>
    %45 = arith.maximumf %43, %44 : vector<16x16xf32>
    %cst_17 = arith.constant 0.000000e+00 : f32
    %46 = vector.broadcast %cst_17 : f32 to vector<16x16xf32>
    %47 = arith.select %27, %46, %45 : vector<16x16xi1>, vector<16x16xf32>
    %cst_18 = arith.constant 0.000000e+00 : f32
    %48 = vector.broadcast %cst_18 : f32 to vector<16x16xf32>
    %49 = arith.cmpf one, %47, %48 : vector<16x16xf32>
    %50 = arith.extui %49 : vector<16x16xi1> to vector<16x16xi32>
    %51 = arith.sitofp %50 : vector<16x16xi32> to vector<16x16xf32>
    %cst_19 = arith.constant dense<0.000000e+00> : vector<16xf32>
    %52 = vector.multi_reduction <add>, %51, %cst_19 [1] : vector<16x16xf32> to vector<16xf32>
    %53 = vector.shape_cast %52 : vector<16xf32> to vector<16x1xf32>
    %cst_20 = arith.constant dense<0.000000e+00> : vector<1xf32>
    %54 = vector.multi_reduction <add>, %53, %cst_20 [0] : vector<16x1xf32> to vector<1xf32>
    %55 = vector.shape_cast %54 : vector<1xf32> to vector<1x1xf32>
    %cst_21 = arith.constant dense<0.000000e+00> : vector<16xf32>
    %56 = vector.multi_reduction <add>, %47, %cst_21 [1] : vector<16x16xf32> to vector<16xf32>
    %57 = vector.shape_cast %56 : vector<16xf32> to vector<16x1xf32>
    %cst_22 = arith.constant dense<0.000000e+00> : vector<1xf32>
    %58 = vector.multi_reduction <add>, %57, %cst_22 [0] : vector<16x1xf32> to vector<1xf32>
    %59 = vector.shape_cast %58 : vector<1xf32> to vector<1x1xf32>
    %60 = arith.mulf %47, %47 : vector<16x16xf32>
    %cst_23 = arith.constant dense<0.000000e+00> : vector<16xf32>
    %61 = vector.multi_reduction <add>, %60, %cst_23 [1] : vector<16x16xf32> to vector<16xf32>
    %62 = vector.shape_cast %61 : vector<16xf32> to vector<16x1xf32>
    %cst_24 = arith.constant dense<0.000000e+00> : vector<1xf32>
    %63 = vector.multi_reduction <add>, %62, %cst_24 [0] : vector<16x1xf32> to vector<1xf32>
    %64 = vector.shape_cast %63 : vector<1xf32> to vector<1x1xf32>
    %65 = arith.mulf %59, %59 : vector<1x1xf32>
    %66 = arith.divf %65, %55 : vector<1x1xf32>
    %67 = arith.subf %64, %66 : vector<1x1xf32>
    %cst_25 = arith.constant 1.000000e+00 : f32
    %68 = vector.broadcast %cst_25 : f32 to vector<1x1xf32>
    %69 = arith.subf %55, %68 : vector<1x1xf32>
    %70 = arith.divf %67, %69 : vector<1x1xf32>
    %71 = math.rsqrt %70 : vector<1x1xf32>
    %72 = vector.broadcast %71 : vector<1x1xf32> to vector<16x16xf32>
    %73 = arith.mulf %47, %72 : vector<16x16xf32>
    %cst_26 = arith.constant 0.000000e+00 : f32
    %74 = vector.broadcast %cst_26 : f32 to vector<16x16xf32>
    %75 = arith.subf %74, %73 : vector<16x16xf32>
    %76 = math.exp %75 : vector<16x16xf32>
    %cst_27 = arith.constant 0.000000e+00 : f32
    %77 = vector.broadcast %cst_27 : f32 to vector<16x16xf32>
    %78 = arith.select %27, %77, %76 : vector<16x16xi1>, vector<16x16xf32>
    %cst_28 = arith.constant dense<0.000000e+00> : vector<16xf32>
    %79 = vector.multi_reduction <add>, %78, %cst_28 [1] : vector<16x16xf32> to vector<16xf32>
    %80 = vector.shape_cast %79 : vector<16xf32> to vector<16x1xf32>
    %cst_29 = arith.constant 9.99999974E-5 : f32
    %81 = vector.broadcast %cst_29 : f32 to vector<16x1xf32>
    %82 = arith.addf %81, %80 : vector<16x1xf32>
    %83 = math.rsqrt %82 : vector<16x1xf32>
    %84 = arith.mulf %83, %83 : vector<16x1xf32>
    %cst_30 = arith.constant 5.000000e-01 : f32
    %85 = vector.broadcast %cst_30 : f32 to vector<16x1xf32>
    %86 = arith.mulf %85, %84 : vector<16x1xf32>
    %87 = vector.broadcast %86 : vector<16x1xf32> to vector<16x16xf32>
    %88 = arith.mulf %87, %78 : vector<16x16xf32>
    %89 = arith.mulf %82, %83 : vector<16x1xf32>
    %90 = vector.broadcast %83 : vector<16x1xf32> to vector<16x32xf32>
    %91 = arith.mulf %12, %90 : vector<16x32xf32>
    %92 = arith.truncf %88 : vector<16x16xf32> to vector<16x16xbf16>
    %93 = arith.truncf %91 : vector<16x32xf32> to vector<16x32xbf16>
    %cst_31 = arith.constant dense<0.000000e+00> : vector<16x32xf32>
    %94 = tpu.matmul %92, %93, %cst_31 {dimension_numbers = #tpu.dot_dimension_numbers<[1], [0], [0], [1], [0, 0, 1, 1], [], []>} : vector<16x16xbf16>, vector<16x32xbf16>, vector<16x32xf32> -> vector<16x32xf32>
    %95 = arith.addf %91, %94 : vector<16x32xf32>
    %cst_32 = arith.constant dense<0.000000e+00> : vector<16x16xf32>
    %96 = tpu.matmul %92, %92, %cst_32 {dimension_numbers = #tpu.dot_dimension_numbers<[1], [0], [0], [1], [0, 0, 1, 1], [], []>} : vector<16x16xbf16>, vector<16x16xbf16>, vector<16x16xf32> -> vector<16x16xf32>
    %97 = arith.truncf %96 : vector<16x16xf32> to vector<16x16xbf16>
    %98 = arith.truncf %95 : vector<16x32xf32> to vector<16x32xbf16>
    %cst_33 = arith.constant dense<0.000000e+00> : vector<16x32xf32>
    %99 = tpu.matmul %97, %98, %cst_33 {dimension_numbers = #tpu.dot_dimension_numbers<[1], [0], [0], [1], [0, 0, 1, 1], [], []>} : vector<16x16xbf16>, vector<16x32xbf16>, vector<16x32xf32> -> vector<16x32xf32>
    %100 = arith.addf %95, %99 : vector<16x32xf32>
    %cst_34 = arith.constant dense<0.000000e+00> : vector<16x16xf32>
    %101 = tpu.matmul %97, %97, %cst_34 {dimension_numbers = #tpu.dot_dimension_numbers<[1], [0], [0], [1], [0, 0, 1, 1], [], []>} : vector<16x16xbf16>, vector<16x16xbf16>, vector<16x16xf32> -> vector<16x16xf32>
    %102 = arith.truncf %101 : vector<16x16xf32> to vector<16x16xbf16>
    %103 = arith.truncf %100 : vector<16x32xf32> to vector<16x32xbf16>
    %cst_35 = arith.constant dense<0.000000e+00> : vector<16x32xf32>
    %104 = tpu.matmul %102, %103, %cst_35 {dimension_numbers = #tpu.dot_dimension_numbers<[1], [0], [0], [1], [0, 0, 1, 1], [], []>} : vector<16x16xbf16>, vector<16x32xbf16>, vector<16x32xf32> -> vector<16x32xf32>
    %105 = arith.addf %100, %104 : vector<16x32xf32>
    %cst_36 = arith.constant dense<0.000000e+00> : vector<16x16xf32>
    %106 = tpu.matmul %102, %102, %cst_36 {dimension_numbers = #tpu.dot_dimension_numbers<[1], [0], [0], [1], [0, 0, 1, 1], [], []>} : vector<16x16xbf16>, vector<16x16xbf16>, vector<16x16xf32> -> vector<16x16xf32>
    %107 = arith.truncf %106 : vector<16x16xf32> to vector<16x16xbf16>
    %108 = arith.truncf %105 : vector<16x32xf32> to vector<16x32xbf16>
    %cst_37 = arith.constant dense<0.000000e+00> : vector<16x32xf32>
    %109 = tpu.matmul %107, %108, %cst_37 {dimension_numbers = #tpu.dot_dimension_numbers<[1], [0], [0], [1], [0, 0, 1, 1], [], []>} : vector<16x16xbf16>, vector<16x32xbf16>, vector<16x32xf32> -> vector<16x32xf32>
    %110 = arith.addf %105, %109 : vector<16x32xf32>
    %cst_38 = arith.constant dense<0.000000e+00> : vector<16x16xf32>
    %111 = tpu.matmul %107, %107, %cst_38 {dimension_numbers = #tpu.dot_dimension_numbers<[1], [0], [0], [1], [0, 0, 1, 1], [], []>} : vector<16x16xbf16>, vector<16x16xbf16>, vector<16x16xf32> -> vector<16x16xf32>
    %112 = arith.truncf %111 : vector<16x16xf32> to vector<16x16xbf16>
    %113 = arith.truncf %110 : vector<16x32xf32> to vector<16x32xbf16>
    %cst_39 = arith.constant dense<0.000000e+00> : vector<16x32xf32>
    %114 = tpu.matmul %112, %113, %cst_39 {dimension_numbers = #tpu.dot_dimension_numbers<[1], [0], [0], [1], [0, 0, 1, 1], [], []>} : vector<16x16xbf16>, vector<16x32xbf16>, vector<16x32xf32> -> vector<16x32xf32>
    %115 = arith.addf %110, %114 : vector<16x32xf32>
    %cst_40 = arith.constant dense<0.000000e+00> : vector<16x32xf32>
    %116 = tpu.matmul %88, %115, %cst_40 {dimension_numbers = #tpu.dot_dimension_numbers<[1], [0], [0], [1], [0, 0, 1, 1], [], []>} : vector<16x16xf32>, vector<16x32xf32>, vector<16x32xf32> -> vector<16x32xf32>
    %117 = arith.addf %91, %116 : vector<16x32xf32>
    %cst_41 = arith.constant 5.000000e-01 : f32
    %118 = vector.broadcast %cst_41 : f32 to vector<16x1xf32>
    %119 = arith.mulf %118, %89 : vector<16x1xf32>
    %120 = vector.broadcast %119 : vector<16x1xf32> to vector<16x32xf32>
    %121 = arith.mulf %120, %117 : vector<16x32xf32>
    %cst_42 = arith.constant dense<0.000000e+00> : vector<16x16xf32>
    %122 = tpu.matmul %121, %121, %cst_42 {dimension_numbers = #tpu.dot_dimension_numbers<[1], [1], [0], [0], [0, 0, 1, 0], [], []>} : vector<16x32xf32>, vector<16x32xf32>, vector<16x16xf32> -> vector<16x16xf32>
    %123 = arith.mulf %121, %121 : vector<16x32xf32>
    %cst_43 = arith.constant dense<0.000000e+00> : vector<16xf32>
    %124 = vector.multi_reduction <add>, %123, %cst_43 [1] : vector<16x32xf32> to vector<16xf32>
    %125 = vector.shape_cast %124 : vector<16xf32> to vector<16x1xf32>
    %cst_44 = arith.constant 0.000000e+00 : f32
    %126 = vector.broadcast %cst_44 : f32 to vector<16x16xf32>
    %127 = arith.select %27, %122, %126 : vector<16x16xi1>, vector<16x16xf32>
    %cst_45 = arith.constant dense<0.000000e+00> : vector<16xf32>
    %128 = vector.multi_reduction <add>, %127, %cst_45 [0] : vector<16x16xf32> to vector<16xf32>
    %129 = vector.shape_cast %128 : vector<16xf32> to vector<1x16xf32>
    %130 = vector.broadcast %125 : vector<16x1xf32> to vector<16x16xf32>
    %131 = vector.broadcast %129 : vector<1x16xf32> to vector<16x16xf32>
    %132 = arith.addf %130, %131 : vector<16x16xf32>
    %cst_46 = arith.constant 2.000000e+00 : f32
    %133 = vector.broadcast %cst_46 : f32 to vector<16x16xf32>
    %134 = arith.mulf %133, %122 : vector<16x16xf32>
    %135 = arith.subf %132, %134 : vector<16x16xf32>
    %cst_47 = arith.constant 0.176776692 : f32
    %136 = vector.broadcast %cst_47 : f32 to vector<16x16xf32>
    %137 = arith.mulf %135, %136 : vector<16x16xf32>
    %cst_48 = arith.constant 0.000000e+00 : f32
    %138 = vector.broadcast %cst_48 : f32 to vector<16x16xf32>
    %139 = arith.maximumf %137, %138 : vector<16x16xf32>
    %cst_49 = arith.constant 0.000000e+00 : f32
    %140 = vector.broadcast %cst_49 : f32 to vector<16x16xf32>
    %141 = arith.select %27, %140, %139 : vector<16x16xi1>, vector<16x16xf32>
    %cst_50 = arith.constant 0.000000e+00 : f32
    %142 = vector.broadcast %cst_50 : f32 to vector<16x16xf32>
    %143 = arith.cmpf one, %141, %142 : vector<16x16xf32>
    %144 = arith.extui %143 : vector<16x16xi1> to vector<16x16xi32>
    %145 = arith.sitofp %144 : vector<16x16xi32> to vector<16x16xf32>
    %cst_51 = arith.constant dense<0.000000e+00> : vector<16xf32>
    %146 = vector.multi_reduction <add>, %145, %cst_51 [1] : vector<16x16xf32> to vector<16xf32>
    %147 = vector.shape_cast %146 : vector<16xf32> to vector<16x1xf32>
    %cst_52 = arith.constant dense<0.000000e+00> : vector<1xf32>
    %148 = vector.multi_reduction <add>, %147, %cst_52 [0] : vector<16x1xf32> to vector<1xf32>
    %149 = vector.shape_cast %148 : vector<1xf32> to vector<1x1xf32>
    %cst_53 = arith.constant dense<0.000000e+00> : vector<16xf32>
    %150 = vector.multi_reduction <add>, %141, %cst_53 [1] : vector<16x16xf32> to vector<16xf32>
    %151 = vector.shape_cast %150 : vector<16xf32> to vector<16x1xf32>
    %cst_54 = arith.constant dense<0.000000e+00> : vector<1xf32>
    %152 = vector.multi_reduction <add>, %151, %cst_54 [0] : vector<16x1xf32> to vector<1xf32>
    %153 = vector.shape_cast %152 : vector<1xf32> to vector<1x1xf32>
    %154 = arith.mulf %141, %141 : vector<16x16xf32>
    %cst_55 = arith.constant dense<0.000000e+00> : vector<16xf32>
    %155 = vector.multi_reduction <add>, %154, %cst_55 [1] : vector<16x16xf32> to vector<16xf32>
    %156 = vector.shape_cast %155 : vector<16xf32> to vector<16x1xf32>
    %cst_56 = arith.constant dense<0.000000e+00> : vector<1xf32>
    %157 = vector.multi_reduction <add>, %156, %cst_56 [0] : vector<16x1xf32> to vector<1xf32>
    %158 = vector.shape_cast %157 : vector<1xf32> to vector<1x1xf32>
    %159 = arith.mulf %153, %153 : vector<1x1xf32>
    %160 = arith.divf %159, %149 : vector<1x1xf32>
    %161 = arith.subf %158, %160 : vector<1x1xf32>
    %cst_57 = arith.constant 1.000000e+00 : f32
    %162 = vector.broadcast %cst_57 : f32 to vector<1x1xf32>
    %163 = arith.subf %149, %162 : vector<1x1xf32>
    %164 = arith.divf %161, %163 : vector<1x1xf32>
    %165 = math.rsqrt %164 : vector<1x1xf32>
    %166 = vector.broadcast %165 : vector<1x1xf32> to vector<16x16xf32>
    %167 = arith.mulf %141, %166 : vector<16x16xf32>
    %cst_58 = arith.constant 0.000000e+00 : f32
    %168 = vector.broadcast %cst_58 : f32 to vector<16x16xf32>
    %169 = arith.subf %168, %167 : vector<16x16xf32>
    %170 = math.exp %169 : vector<16x16xf32>
    %cst_59 = arith.constant 0.000000e+00 : f32
    %171 = vector.broadcast %cst_59 : f32 to vector<16x16xf32>
    %172 = arith.select %27, %171, %170 : vector<16x16xi1>, vector<16x16xf32>
    %cst_60 = arith.constant dense<0.000000e+00> : vector<16xf32>
    %173 = vector.multi_reduction <add>, %172, %cst_60 [1] : vector<16x16xf32> to vector<16xf32>
    %174 = vector.shape_cast %173 : vector<16xf32> to vector<16x1xf32>
    %cst_61 = arith.constant 9.99999974E-5 : f32
    %175 = vector.broadcast %cst_61 : f32 to vector<16x1xf32>
    %176 = arith.addf %175, %174 : vector<16x1xf32>
    %177 = math.rsqrt %176 : vector<16x1xf32>
    %178 = arith.mulf %177, %177 : vector<16x1xf32>
    %cst_62 = arith.constant 5.000000e-01 : f32
    %179 = vector.broadcast %cst_62 : f32 to vector<16x1xf32>
    %180 = arith.mulf %179, %178 : vector<16x1xf32>
    %181 = vector.broadcast %180 : vector<16x1xf32> to vector<16x16xf32>
    %182 = arith.mulf %181, %172 : vector<16x16xf32>
    %183 = arith.mulf %176, %177 : vector<16x1xf32>
    %184 = vector.broadcast %177 : vector<16x1xf32> to vector<16x4xf32>
    %185 = arith.mulf %24, %184 : vector<16x4xf32>
    %186 = arith.truncf %182 : vector<16x16xf32> to vector<16x16xbf16>
    %187 = arith.truncf %185 : vector<16x4xf32> to vector<16x4xbf16>
    %cst_63 = arith.constant dense<0.000000e+00> : vector<16x4xf32>
    %188 = tpu.matmul %186, %187, %cst_63 {dimension_numbers = #tpu.dot_dimension_numbers<[1], [0], [0], [1], [0, 0, 1, 1], [], []>} : vector<16x16xbf16>, vector<16x4xbf16>, vector<16x4xf32> -> vector<16x4xf32>
    %189 = arith.addf %185, %188 : vector<16x4xf32>
    %cst_64 = arith.constant dense<0.000000e+00> : vector<16x16xf32>
    %190 = tpu.matmul %186, %186, %cst_64 {dimension_numbers = #tpu.dot_dimension_numbers<[1], [0], [0], [1], [0, 0, 1, 1], [], []>} : vector<16x16xbf16>, vector<16x16xbf16>, vector<16x16xf32> -> vector<16x16xf32>
    %191 = arith.truncf %190 : vector<16x16xf32> to vector<16x16xbf16>
    %192 = arith.truncf %189 : vector<16x4xf32> to vector<16x4xbf16>
    %cst_65 = arith.constant dense<0.000000e+00> : vector<16x4xf32>
    %193 = tpu.matmul %191, %192, %cst_65 {dimension_numbers = #tpu.dot_dimension_numbers<[1], [0], [0], [1], [0, 0, 1, 1], [], []>} : vector<16x16xbf16>, vector<16x4xbf16>, vector<16x4xf32> -> vector<16x4xf32>
    %194 = arith.addf %189, %193 : vector<16x4xf32>
    %cst_66 = arith.constant dense<0.000000e+00> : vector<16x16xf32>
    %195 = tpu.matmul %191, %191, %cst_66 {dimension_numbers = #tpu.dot_dimension_numbers<[1], [0], [0], [1], [0, 0, 1, 1], [], []>} : vector<16x16xbf16>, vector<16x16xbf16>, vector<16x16xf32> -> vector<16x16xf32>
    %196 = arith.truncf %195 : vector<16x16xf32> to vector<16x16xbf16>
    %197 = arith.truncf %194 : vector<16x4xf32> to vector<16x4xbf16>
    %cst_67 = arith.constant dense<0.000000e+00> : vector<16x4xf32>
    %198 = tpu.matmul %196, %197, %cst_67 {dimension_numbers = #tpu.dot_dimension_numbers<[1], [0], [0], [1], [0, 0, 1, 1], [], []>} : vector<16x16xbf16>, vector<16x4xbf16>, vector<16x4xf32> -> vector<16x4xf32>
    %199 = arith.addf %194, %198 : vector<16x4xf32>
    %cst_68 = arith.constant dense<0.000000e+00> : vector<16x16xf32>
    %200 = tpu.matmul %196, %196, %cst_68 {dimension_numbers = #tpu.dot_dimension_numbers<[1], [0], [0], [1], [0, 0, 1, 1], [], []>} : vector<16x16xbf16>, vector<16x16xbf16>, vector<16x16xf32> -> vector<16x16xf32>
    %201 = arith.truncf %200 : vector<16x16xf32> to vector<16x16xbf16>
    %202 = arith.truncf %199 : vector<16x4xf32> to vector<16x4xbf16>
    %cst_69 = arith.constant dense<0.000000e+00> : vector<16x4xf32>
    %203 = tpu.matmul %201, %202, %cst_69 {dimension_numbers = #tpu.dot_dimension_numbers<[1], [0], [0], [1], [0, 0, 1, 1], [], []>} : vector<16x16xbf16>, vector<16x4xbf16>, vector<16x4xf32> -> vector<16x4xf32>
    %204 = arith.addf %199, %203 : vector<16x4xf32>
    %cst_70 = arith.constant dense<0.000000e+00> : vector<16x16xf32>
    %205 = tpu.matmul %201, %201, %cst_70 {dimension_numbers = #tpu.dot_dimension_numbers<[1], [0], [0], [1], [0, 0, 1, 1], [], []>} : vector<16x16xbf16>, vector<16x16xbf16>, vector<16x16xf32> -> vector<16x16xf32>
    %206 = arith.truncf %205 : vector<16x16xf32> to vector<16x16xbf16>
    %207 = arith.truncf %204 : vector<16x4xf32> to vector<16x4xbf16>
    %cst_71 = arith.constant dense<0.000000e+00> : vector<16x4xf32>
    %208 = tpu.matmul %206, %207, %cst_71 {dimension_numbers = #tpu.dot_dimension_numbers<[1], [0], [0], [1], [0, 0, 1, 1], [], []>} : vector<16x16xbf16>, vector<16x4xbf16>, vector<16x4xf32> -> vector<16x4xf32>
    %209 = arith.addf %204, %208 : vector<16x4xf32>
    %cst_72 = arith.constant dense<0.000000e+00> : vector<16x4xf32>
    %210 = tpu.matmul %182, %209, %cst_72 {dimension_numbers = #tpu.dot_dimension_numbers<[1], [0], [0], [1], [0, 0, 1, 1], [], []>} : vector<16x16xf32>, vector<16x4xf32>, vector<16x4xf32> -> vector<16x4xf32>
    %211 = arith.addf %185, %210 : vector<16x4xf32>
    %cst_73 = arith.constant 5.000000e-01 : f32
    %212 = vector.broadcast %cst_73 : f32 to vector<16x1xf32>
    %213 = arith.mulf %212, %183 : vector<16x1xf32>
    %214 = vector.broadcast %213 : vector<16x1xf32> to vector<16x4xf32>
    %215 = arith.mulf %214, %211 : vector<16x4xf32>
    %216 = vector.extract_strided_slice %215 {offsets = [8, 0], sizes = [8, 4], strides = [1, 1]} : vector<16x4xf32> to vector<8x4xf32>
    %cst_74 = arith.constant 9.99999997E-7 : f32
    %217 = vector.broadcast %cst_74 : f32 to vector<8x4xf32>
    %218 = arith.addf %216, %217 : vector<8x4xf32>
    %219 = math.log %218 : vector<8x4xf32>
    %c0_75 = arith.constant 0 : index
    %c0_76 = arith.constant 0 : index
    %220 = vector.load %arg4[%c0_75, %c0_76] : memref<8x4xf32, #tpu.memory_space<vmem>>, vector<8x4xf32>
    tpu.vector_store %arg4[%c0_75, %c0_76], %219 {strides = array<i32>} : memref<8x4xf32, #tpu.memory_space<vmem>>, vector<8x4xf32>,
    return
  }
  func.func @transform_0(%arg0: i32) -> (i32, i32) {
    %c0_i32 = arith.constant 0 : i32
    %c0_i32_0 = arith.constant 0 : i32
    %c0_i32_1 = arith.constant 0 : i32
    return %c0_i32, %c0_i32_0 : i32, i32
  }
  func.func @transform_1(%arg0: i32) -> (i32, i32) {
    %c0_i32 = arith.constant 0 : i32
    %c0_i32_0 = arith.constant 0 : i32
    %c0_i32_1 = arith.constant 0 : i32
    return %c0_i32, %c0_i32_0 : i32, i32
  }
  func.func @transform_2(%arg0: i32) -> (i32, i32) {
    %c0_i32 = arith.constant 0 : i32
    %c0_i32_0 = arith.constant 0 : i32
    %c0_i32_1 = arith.constant 0 : i32
    return %c0_i32, %c0_i32_0 : i32, i32
  }
  func.func @transform_3(%arg0: i32) -> (i32, i32) {
    %c0_i32 = arith.constant 0 : i32
    %c0_i32_0 = arith.constant 0 : i32
    %c0_i32_1 = arith.constant 0 : i32
    return %c0_i32, %c0_i32_0 : i32, i32
  }
}

</mosaic_0001>

<llo_original>
// kernel: tpu_custom_call.1
$region0: #{tpu_custom_call.1}
  #allocation0 [shape = 'u32[]', space=smem, size = 0x4, offset = 0x4, fixed_abs, tag = 'smem constant byte address 0x4 - core index']
  #allocation1 [shape = 'u32[144,128]{1,0:T(1,128)}', space=vmem, size = 0x12000, scoped, tag = 'internal scratch']
  %s0 = inlined_call_operand.vmem [shape: f32[16,32], index: 0, kind: input, shape index: {}]
  %s1 = inlined_call_operand.vmem [shape: f32[1,32], index: 1, kind: input, shape index: {}]
  %s2 = inlined_call_operand.vmem [shape: s32[16,1], index: 2, kind: input, shape index: {}]
  %s3 = inlined_call_operand.vmem [shape: f32[8,4], index: 3, kind: output, shape index: {}]
  %s4 = sld [smem:[#allocation0]]
  $region22: #{tpu_custom_call.1} parent=0
    _
  %s6 = ssub.s32 1, %s4
  %s7 = scalar_select 0, %s6, %s4
  // Predicated region
  $region2: #{tpu_custom_call.1} parent=0 // pred_check
    _
  $region3: #{tpu_custom_call.1} parent=0 // pred_check_branch
    %9 = sbr.rel (0) target = $region5
  $region4: #{tpu_custom_call.1} parent=0 // pred_region
    _
  $region5: #{tpu_custom_call.1} parent=0 // pred_fallthru
    _
  // Predicated region
  $region6: #{tpu_custom_call.1} parent=0 // pred_check
    _
  $region7: #{tpu_custom_call.1} parent=0 // pred_check_branch
    %11 = sbr.rel (0) target = $region9
  $region8: #{tpu_custom_call.1} parent=0 // pred_region
    _
  $region9: #{tpu_custom_call.1} parent=0 // pred_fallthru
    _
  // Predicated region
  $region10: #{tpu_custom_call.1} parent=0 // pred_check
    _
  $region11: #{tpu_custom_call.1} parent=0 // pred_check_branch
    %13 = sbr.rel (0) target = $region13
  $region12: #{tpu_custom_call.1} parent=0 // pred_region
    _
  $region13: #{tpu_custom_call.1} parent=0 // pred_fallthru
    _
  %v15 = vld [vmem:[%s1] sm:$0x1]
  %v16 = vld [vmem:[%s0] sm:$0xff]
  %v17 = vld [vmem:[%s0 + $0x8] sm:$0xff]
  %v18 = vadd.f32 %v15, 1.0
  %v19 = vsub.f32 0.0, %v18
  %v20 = vmul.f32 %v19, 1.442695
  %v21 = vpow.pop %v20
  %v22 = vadd.f32 %v21, 1.0
  %v23 = vrcp.pop %v22
  %v24 = vmul.f32 1.0, %v23
  %v26 = vlaneseq
  %v27 = vshrl.u32 %v26, 7
  %v28 = vsub.s32 0, %v27
  %v29 = vrot.slane %v24, %v28
  %v31 = vmul.f32 %v16, %v29
  %v32 = vmul.f32 %v17, %v29
  %v33 = vld [vmem:[%s2] sm:$0xff]
  %v34 = vld [vmem:[%s2 + $0x8] sm:$0xff]
  %v35 = vlaneseq
  %v36 = vshrl.u32 %v35, 7
  %v37 = vadd.s32 %v36, 8
  %v38 = vlaneseq
  %v39 = vand.u32 %v38, 127
  %40 = vset.pattern.permute.xlu0 0
  %41 = vperm.xlu0 %40, %v33
  %v42 = vpop.permute.xlu0 %41
  %43 = vset.pattern.permute.xlu0 0
  %44 = vperm.xlu0 %43, %v34
  %v45 = vpop.permute.xlu0 %44
  %vm46 = vcmp.eq.s32.totalorder %v39, %v42
  %vm47 = vcmp.eq.s32.totalorder %v39, %v45
  %vm48 = vcmp.lt.s32.totalorder %v36, 8
  %vm49 = vcmp.lt.s32.totalorder %v37, 8
  %v50 = vsel %vm48, 1, 0
  %v51 = vsel %vm49, 1, 0
  %vm52 = vcmp.eq.s32.totalorder %v50, 1
  %vm53 = vcmp.eq.s32.totalorder %v51, 1
  %vm54 = vmand %vm46, %vm52
  %vm55 = vmand %vm47, %vm53
  %v56 = vsel %vm54, 1.0, 0.0
  %v57 = vsel %vm55, 1.0, 0.0
  %vm58 = vcmp.eq.s32.totalorder %v36, %v39
  %vm59 = vcmp.eq.s32.totalorder %v37, %v39
  %vm60 = vcmask 261120
  %v62 = vsel %vm60, %v31, 0
  %v65 = vsel %vm60, %v32, 0
  %67 = vmatprep.subr.mxu0 0.0
  %68 = vmatpush1.xpose.msra.mxu0 %v62
  %69 = vmatprep.subr.mxu0 0.0
  %70 = vmatpush1.xpose.msra.mxu0 %v65
  %71 = vmatprep.subr.mxu0 0.0
  %72 = vmatpush1.xpose.msra.mxu0 0.0
  %73 = vmatprep.subr.mxu0 0.0
  %74 = vmatpush1.xpose.msra.mxu0 0.0
  %75 = vmatprep.subr.mxu0 0.0
  %76 = vmatpush1.xpose.msra.mxu0 0.0
  %77 = vmatprep.subr.mxu0 0.0
  %78 = vmatpush1.xpose.msra.mxu0 0.0
  %79 = vmatprep.subr.mxu0 0.0
  %80 = vmatpush1.xpose.msra.mxu0 0.0
  %81 = vmatprep.subr.mxu0 0.0
  %82 = vmatpush1.xpose.msra.mxu0 0.0
  %83 = vmatprep.subr.mxu0 0.0
  %84 = vmatpush1.xpose.msra.mxu0 0.0
  %85 = vmatprep.subr.mxu0 0.0
  %86 = vmatpush1.xpose.msra.mxu0 0.0
  %87 = vmatprep.subr.mxu0 0.0
  %88 = vmatpush1.xpose.msra.mxu0 0.0
  %89 = vmatprep.subr.mxu0 0.0
  %90 = vmatpush1.xpose.msra.mxu0 0.0
  %91 = vmatprep.subr.mxu0 0.0
  %92 = vmatpush1.xpose.msra.mxu0 0.0
  %93 = vmatprep.subr.mxu0 0.0
  %94 = vmatpush1.xpose.msra.mxu0 0.0
  %95 = vmatprep.subr.mxu0 0.0
  %96 = vmatpush1.xpose.msra.mxu0 0.0
  %97 = vmatprep.subr.mxu0 0.0
  %98 = vmatpush1.xpose.msra.mxu0 0.0
  %99 = vmatprep.subr.mxu0 0.0
  %100 = vmatpush1.xpose.msra.mxu0 0.0
  %101 = vmatprep.subr.mxu0 0.0
  %102 = vmatpush1.xpose.msra.mxu0 0.0
  %103 = vmatprep.subr.mxu0 0.0
  %104 = vmatpush1.xpose.msra.mxu0 0.0
  %105 = vmatprep.subr.mxu0 0.0
  %106 = vmatpush1.xpose.msra.mxu0 0.0
  %107 = vmatprep.subr.mxu0 0.0
  %108 = vmatpush1.xpose.msra.mxu0 0.0
  %109 = vmatprep.subr.mxu0 0.0
  %110 = vmatpush1.xpose.msra.mxu0 0.0
  %111 = vmatprep.subr.mxu0 0.0
  %112 = vmatpush1.xpose.msra.mxu0 0.0
  %113 = vmatprep.subr.mxu0 0.0
  %114 = vmatpush1.xpose.msra.mxu0 0.0
  %115 = vmatprep.subr.mxu0 0.0
  %116 = vmatpush1.xpose.msra.mxu0 0.0
  %117 = vmatprep.subr.mxu0 0.0
  %118 = vmatpush1.xpose.msra.mxu0 0.0
  %119 = vmatprep.subr.mxu0 0.0
  %120 = vmatpush1.xpose.msra.mxu0 0.0
  %121 = vmatprep.subr.mxu0 0.0
  %122 = vmatpush1.xpose.msra.mxu0 0.0
  %123 = vmatprep.subr.mxu0 0.0
  %124 = vmatpush1.xpose.msra.mxu0 0.0
  %125 = vmatprep.subr.mxu0 0.0
  %126 = vmatpush1.xpose.msra.mxu0 0.0
  %127 = vmatprep.subr.mxu0 0.0
  %128 = vmatpush1.xpose.msra.mxu0 0.0
  %129 = vmatprep.subr.mxu0 0.0
  %130 = vmatpush1.xpose.msra.mxu0 0.0
  %131 = vmatprep.mubr.f32.mxu0 0.0
  %132 = vmatmul.mubr.f32.gmra.mrb[0].mxu0 %v62
  %v133 = vpop.f32.mrb[0].mxu0
  %v134 = vadd.f32 0.0, %v133
  %v135 = vpop.f32.mrb[0].mxu0
  %136 = vmatprep.mubr.f32.mxu0 0.0
  %137 = vmatmul.mubr.f32.gmra.mrb[0].mxu0 %v65
  %v138 = vpop.f32.mrb[0].mxu0
  %v139 = vadd.f32 0.0, %v138
  %v140 = vpop.f32.mrb[0].mxu0
  %141 = vdwg.mxu0
  %v142 = vmul.f32 %v31, %v31
  %v143 = vmul.f32 %v32, %v32
  %v144 = vsel %vm60, %v142, 0.0
  %145 = vadd.xlane.f32.xlu0 %v144
  %v146 = vpop.xlane.xlu0 %145
  %v147 = vsel %vm60, %v143, 0.0
  %148 = vadd.xlane.f32.xlu0 %v147
  %v149 = vpop.xlane.xlu0 %148
  %v150 = vsel %vm58, %v134, 0.0
  %v151 = vsel %vm59, %v139, 0.0
  %vm152 = vcmask 130048
  %v153 = vsel %vm152, %v150, 0.0
  %v154 = vsel %vm152, %v151, 0.0
  %v155 = vadd.f32 %v153, %v154
  %v156 = vrot.slane %v155, 4
  %v157 = vadd.f32 %v155, %v156
  %v158 = vrot.slane %v157, 2
  %v159 = vadd.f32 %v157, %v158
  %v160 = vrot.slane %v159, 1
  %v161 = vadd.f32 %v159, %v160
  %v162 = vadd.f32 %v146, %v161
  %v163 = vadd.f32 %v149, %v161
  %v164 = vmul.f32 %v134, 2.0
  %v165 = vmul.f32 %v139, 2.0
  %v166 = vsub.f32 %v162, %v164
  %v167 = vsub.f32 %v163, %v165
  %v168 = vmul.f32 %v166, 0.17677669
  %v169 = vmul.f32 %v167, 0.17677669
  %v170 = vmax.f32 %v168, 0.0
  %v171 = vmax.f32 %v169, 0.0
  %v172 = vsel %vm58, 0.0, %v170
  %v173 = vsel %vm59, 0.0, %v171
  %vm174 = vcmp.ne.f32.partialorder %v172, 0.0
  %vm175 = vcmp.ne.f32.partialorder %v173, 0.0
  %v176 = vsel %vm174, 1, 0
  %v177 = vsel %vm175, 1, 0
  %v178 = vcvt.s32.f32 %v176
  %v179 = vcvt.s32.f32 %v177
  %v180 = vsel %vm152, %v178, 0.0
  %181 = vadd.xlane.f32.xlu0 %v180
  %v182 = vpop.xlane.xlu0 %181
  %v183 = vsel %vm152, %v179, 0.0
  %184 = vadd.xlane.f32.xlu0 %v183
  %v185 = vpop.xlane.xlu0 %184
  %v186 = vadd.f32 %v182, %v185
  %v187 = vrot.slane %v186, 4
  %v188 = vadd.f32 %v186, %v187
  %v189 = vrot.slane %v188, 2
  %v190 = vadd.f32 %v188, %v189
  %v191 = vrot.slane %v190, 1
  %v192 = vadd.f32 %v190, %v191
  %v193 = vsel %vm152, %v172, 0.0
  %194 = vadd.xlane.f32.xlu0 %v193
  %v195 = vpop.xlane.xlu0 %194
  %v196 = vsel %vm152, %v173, 0.0
  %197 = vadd.xlane.f32.xlu0 %v196
  %v198 = vpop.xlane.xlu0 %197
  %v199 = vadd.f32 %v195, %v198
  %v200 = vrot.slane %v199, 4
  %v201 = vadd.f32 %v199, %v200
  %v202 = vrot.slane %v201, 2
  %v203 = vadd.f32 %v201, %v202
  %v204 = vrot.slane %v203, 1
  %v205 = vadd.f32 %v203, %v204
  %v206 = vmul.f32 %v172, %v172
  %v207 = vmul.f32 %v173, %v173
  %v208 = vsel %vm152, %v206, 0.0
  %209 = vadd.xlane.f32.xlu0 %v208
  %v210 = vpop.xlane.xlu0 %209
  %v211 = vsel %vm152, %v207, 0.0
  %212 = vadd.xlane.f32.xlu0 %v211
  %v213 = vpop.xlane.xlu0 %212
  %v214 = vadd.f32 %v210, %v213
  %v215 = vrot.slane %v214, 4
  %v216 = vadd.f32 %v214, %v215
  %v217 = vrot.slane %v216, 2
  %v218 = vadd.f32 %v216, %v217
  %v219 = vrot.slane %v218, 1
  %v220 = vadd.f32 %v218, %v219
  %v221 = vmul.f32 %v205, %v205
  %v222 = vrcp.pop %v192
  %v223 = vmul.f32 %v221, %v222
  %v224 = vsub.f32 %v220, %v223
  %v225 = vsub.f32 %v192, 1.0
  %v226 = vrcp.pop %v225
  %v227 = vmul.f32 %v224, %v226
  %v228 = vrsqrt.pop %v227
  %v229 = vmul.f32 %v172, %v228
  %v230 = vmul.f32 %v173, %v228
  %v231 = vsub.f32 0.0, %v229
  %v232 = vsub.f32 0.0, %v230
  %v233 = vmul.f32 %v231, 1.442695
  %v234 = vpow.pop %v233
  %v235 = vmul.f32 %v232, 1.442695
  %v236 = vpow.pop %v235
  %v237 = vsel %vm58, 0.0, %v234
  %v238 = vsel %vm59, 0.0, %v236
  %v239 = vsel %vm152, %v237, 0.0
  %240 = vadd.xlane.f32.xlu0 %v239
  %v241 = vpop.xlane.xlu0 %240
  %v242 = vsel %vm152, %v238, 0.0
  %243 = vadd.xlane.f32.xlu0 %v242
  %v244 = vpop.xlane.xlu0 %243
  %v245 = vadd.f32 %v241, 0.0001
  %v246 = vadd.f32 %v244, 0.0001
  %v247 = vrsqrt.pop %v245
  %v248 = vrsqrt.pop %v246
  %v249 = vmul.f32 %v247, %v247
  %v250 = vmul.f32 %v248, %v248
  %v251 = vmul.f32 %v249, 0.5
  %v252 = vmul.f32 %v250, 0.5
  %v253 = vmul.f32 %v251, %v237
  %v254 = vmul.f32 %v252, %v238
  %v255 = vmul.f32 %v245, %v247
  %v256 = vmul.f32 %v246, %v248
  %v257 = vmul.f32 %v31, %v247
  %v258 = vmul.f32 %v32, %v248
  %v259 = vpack.c.bf16 %v254, %v253
  %v260 = vpack.c.bf16 %v258, %v257
  %v262 = vsel %vm152, %v259, 0
  %264 = vmatprep.subr.bf16.mxu0 0
  %265 = vmatpush1.bf16.msra.mxu0 %v260
  %266 = vmatprep.subr.bf16.mxu0 0
  %267 = vmatpush1.bf16.msra.mxu0 0
  %268 = vmatprep.subr.bf16.mxu0 0
  %269 = vmatpush1.bf16.msra.mxu0 0
  %270 = vmatprep.subr.bf16.mxu0 0
  %271 = vmatpush1.bf16.msra.mxu0 0
  %272 = vmatprep.subr.bf16.mxu0 0
  %273 = vmatpush1.bf16.msra.mxu0 0
  %274 = vmatprep.subr.bf16.mxu0 0
  %275 = vmatpush1.bf16.msra.mxu0 0
  %276 = vmatprep.subr.bf16.mxu0 0
  %277 = vmatpush1.bf16.msra.mxu0 0
  %278 = vmatprep.subr.bf16.mxu0 0
  %279 = vmatpush1.bf16.msra.mxu0 0
  %280 = vmatprep.subr.bf16.mxu0 0
  %281 = vmatpush1.bf16.msra.mxu0 0
  %282 = vmatprep.subr.bf16.mxu0 0
  %283 = vmatpush1.bf16.msra.mxu0 0
  %284 = vmatprep.subr.bf16.mxu0 0
  %285 = vmatpush1.bf16.msra.mxu0 0
  %286 = vmatprep.subr.bf16.mxu0 0
  %287 = vmatpush1.bf16.msra.mxu0 0
  %288 = vmatprep.subr.bf16.mxu0 0
  %289 = vmatpush1.bf16.msra.mxu0 0
  %290 = vmatprep.subr.bf16.mxu0 0
  %291 = vmatpush1.bf16.msra.mxu0 0
  %292 = vmatprep.subr.bf16.mxu0 0
  %293 = vmatpush1.bf16.msra.mxu0 0
  %294 = vmatprep.subr.bf16.mxu0 0
  %295 = vmatpush1.bf16.msra.mxu0 0
  %296 = vmatprep.mubr.bf16.mxu0 0
  %297 = vmatmul.mubr.bf16.gmra.mrb[0].mxu0 %v262
  %v298 = vpop.f32.mrb[0].mxu0
  %v299 = vadd.f32 0.0, %v298
  %v300 = vpop.f32.mrb[0].mxu0
  %v301 = vpop.f32.mrb[0].mxu0
  %v302 = vadd.f32 0.0, %v301
  %v303 = vpop.f32.mrb[0].mxu0
  %304 = vdwg.mxu0
  %v305 = vadd.f32 %v257, %v299
  %v306 = vadd.f32 %v258, %v302
  %307 = vmatprep.subr.bf16.mxu0 0
  %308 = vmatpush1.bf16.msra.mxu0 %v259
  %309 = vmatprep.subr.bf16.mxu0 0
  %310 = vmatpush1.bf16.msra.mxu0 0
  %311 = vmatprep.subr.bf16.mxu0 0
  %312 = vmatpush1.bf16.msra.mxu0 0
  %313 = vmatprep.subr.bf16.mxu0 0
  %314 = vmatpush1.bf16.msra.mxu0 0
  %315 = vmatprep.subr.bf16.mxu0 0
  %316 = vmatpush1.bf16.msra.mxu0 0
  %317 = vmatprep.subr.bf16.mxu0 0
  %318 = vmatpush1.bf16.msra.mxu0 0
  %319 = vmatprep.subr.bf16.mxu0 0
  %320 = vmatpush1.bf16.msra.mxu0 0
  %321 = vmatprep.subr.bf16.mxu0 0
  %322 = vmatpush1.bf16.msra.mxu0 0
  %323 = vmatprep.subr.bf16.mxu0 0
  %324 = vmatpush1.bf16.msra.mxu0 0
  %325 = vmatprep.subr.bf16.mxu0 0
  %326 = vmatpush1.bf16.msra.mxu0 0
  %327 = vmatprep.subr.bf16.mxu0 0
  %328 = vmatpush1.bf16.msra.mxu0 0
  %329 = vmatprep.subr.bf16.mxu0 0
  %330 = vmatpush1.bf16.msra.mxu0 0
  %331 = vmatprep.subr.bf16.mxu0 0
  %332 = vmatpush1.bf16.msra.mxu0 0
  %333 = vmatprep.subr.bf16.mxu0 0
  %334 = vmatpush1.bf16.msra.mxu0 0
  %335 = vmatprep.subr.bf16.mxu0 0
  %336 = vmatpush1.bf16.msra.mxu0 0
  %337 = vmatprep.subr.bf16.mxu0 0
  %338 = vmatpush1.bf16.msra.mxu0 0
  %339 = vmatprep.mubr.bf16.mxu0 0
  %340 = vmatmul.mubr.bf16.gmra.mrb[0].mxu0 %v262
  %v341 = vpop.f32.mrb[0].mxu0
  %v342 = vadd.f32 0.0, %v341
  %v343 = vpop.f32.mrb[0].mxu0
  %v344 = vpop.f32.mrb[0].mxu0
  %v345 = vadd.f32 0.0, %v344
  %v346 = vpop.f32.mrb[0].mxu0
  %347 = vdwg.mxu0
  %v348 = vpack.c.bf16 %v345, %v342
  %v349 = vpack.c.bf16 %v306, %v305
  %v351 = vsel %vm152, %v348, 0
  %353 = vmatprep.subr.bf16.mxu0 0
  %354 = vmatpush1.bf16.msra.mxu0 %v349
  %355 = vmatprep.subr.bf16.mxu0 0
  %356 = vmatpush1.bf16.msra.mxu0 0
  %357 = vmatprep.subr.bf16.mxu0 0
  %358 = vmatpush1.bf16.msra.mxu0 0
  %359 = vmatprep.subr.bf16.mxu0 0
  %360 = vmatpush1.bf16.msra.mxu0 0
  %361 = vmatprep.subr.bf16.mxu0 0
  %362 = vmatpush1.bf16.msra.mxu0 0
  %363 = vmatprep.subr.bf16.mxu0 0
  %364 = vmatpush1.bf16.msra.mxu0 0
  %365 = vmatprep.subr.bf16.mxu0 0
  %366 = vmatpush1.bf16.msra.mxu0 0
  %367 = vmatprep.subr.bf16.mxu0 0
  %368 = vmatpush1.bf16.msra.mxu0 0
  %369 = vmatprep.subr.bf16.mxu0 0
  %370 = vmatpush1.bf16.msra.mxu0 0
  %371 = vmatprep.subr.bf16.mxu0 0
  %372 = vmatpush1.bf16.msra.mxu0 0
  %373 = vmatprep.subr.bf16.mxu0 0
  %374 = vmatpush1.bf16.msra.mxu0 0
  %375 = vmatprep.subr.bf16.mxu0 0
  %376 = vmatpush1.bf16.msra.mxu0 0
  %377 = vmatprep.subr.bf16.mxu0 0
  %378 = vmatpush1.bf16.msra.mxu0 0
  %379 = vmatprep.subr.bf16.mxu0 0
  %380 = vmatpush1.bf16.msra.mxu0 0
  %381 = vmatprep.subr.bf16.mxu0 0
  %382 = vmatpush1.bf16.msra.mxu0 0
  %383 = vmatprep.subr.bf16.mxu0 0
  %384 = vmatpush1.bf16.msra.mxu0 0
  %385 = vmatprep.mubr.bf16.mxu0 0
  %386 = vmatmul.mubr.bf16.gmra.mrb[0].mxu0 %v351
  %v387 = vpop.f32.mrb[0].mxu0
  %v388 = vadd.f32 0.0, %v387
  %v389 = vpop.f32.mrb[0].mxu0
  %v390 = vpop.f32.mrb[0].mxu0
  %v391 = vadd.f32 0.0, %v390
  %v392 = vpop.f32.mrb[0].mxu0
  %393 = vdwg.mxu0
  %v394 = vadd.f32 %v305, %v388
  %v395 = vadd.f32 %v306, %v391
  %396 = vmatprep.subr.bf16.mxu0 0
  %397 = vmatpush1.bf16.msra.mxu0 %v348
  %398 = vmatprep.subr.bf16.mxu0 0
  %399 = vmatpush1.bf16.msra.mxu0 0
  %400 = vmatprep.subr.bf16.mxu0 0
  %401 = vmatpush1.bf16.msra.mxu0 0
  %402 = vmatprep.subr.bf16.mxu0 0
  %403 = vmatpush1.bf16.msra.mxu0 0
  %404 = vmatprep.subr.bf16.mxu0 0
  %405 = vmatpush1.bf16.msra.mxu0 0
  %406 = vmatprep.subr.bf16.mxu0 0
  %407 = vmatpush1.bf16.msra.mxu0 0
  %408 = vmatprep.subr.bf16.mxu0 0
  %409 = vmatpush1.bf16.msra.mxu0 0
  %410 = vmatprep.subr.bf16.mxu0 0
  %411 = vmatpush1.bf16.msra.mxu0 0
  %412 = vmatprep.subr.bf16.mxu0 0
  %413 = vmatpush1.bf16.msra.mxu0 0
  %414 = vmatprep.subr.bf16.mxu0 0
  %415 = vmatpush1.bf16.msra.mxu0 0
  %416 = vmatprep.subr.bf16.mxu0 0
  %417 = vmatpush1.bf16.msra.mxu0 0
  %418 = vmatprep.subr.bf16.mxu0 0
  %419 = vmatpush1.bf16.msra.mxu0 0
  %420 = vmatprep.subr.bf16.mxu0 0
  %421 = vmatpush1.bf16.msra.mxu0 0
  %422 = vmatprep.subr.bf16.mxu0 0
  %423 = vmatpush1.bf16.msra.mxu0 0
  %424 = vmatprep.subr.bf16.mxu0 0
  %425 = vmatpush1.bf16.msra.mxu0 0
  %426 = vmatprep.subr.bf16.mxu0 0
  %427 = vmatpush1.bf16.msra.mxu0 0
  %428 = vmatprep.mubr.bf16.mxu0 0
  %429 = vmatmul.mubr.bf16.gmra.mrb[0].mxu0 %v351
  %v430 = vpop.f32.mrb[0].mxu0
  %v431 = vadd.f32 0.0, %v430
  %v432 = vpop.f32.mrb[0].mxu0
  %v433 = vpop.f32.mrb[0].mxu0
  %v434 = vadd.f32 0.0, %v433
  %v435 = vpop.f32.mrb[0].mxu0
  %436 = vdwg.mxu0
  %v437 = vpack.c.bf16 %v434, %v431
  %v438 = vpack.c.bf16 %v395, %v394
  %v440 = vsel %vm152, %v437, 0
  %442 = vmatprep.subr.bf16.mxu0 0
  %443 = vmatpush1.bf16.msra.mxu0 %v438
  %444 = vmatprep.subr.bf16.mxu0 0
  %445 = vmatpush1.bf16.msra.mxu0 0
  %446 = vmatprep.subr.bf16.mxu0 0
  %447 = vmatpush1.bf16.msra.mxu0 0
  %448 = vmatprep.subr.bf16.mxu0 0
  %449 = vmatpush1.bf16.msra.mxu0 0
  %450 = vmatprep.subr.bf16.mxu0 0
  %451 = vmatpush1.bf16.msra.mxu0 0
  %452 = vmatprep.subr.bf16.mxu0 0
  %453 = vmatpush1.bf16.msra.mxu0 0
  %454 = vmatprep.subr.bf16.mxu0 0
  %455 = vmatpush1.bf16.msra.mxu0 0
  %456 = vmatprep.subr.bf16.mxu0 0
  %457 = vmatpush1.bf16.msra.mxu0 0
  %458 = vmatprep.subr.bf16.mxu0 0
  %459 = vmatpush1.bf16.msra.mxu0 0
  %460 = vmatprep.subr.bf16.mxu0 0
  %461 = vmatpush1.bf16.msra.mxu0 0
  %462 = vmatprep.subr.bf16.mxu0 0
  %463 = vmatpush1.bf16.msra.mxu0 0
  %464 = vmatprep.subr.bf16.mxu0 0
  %465 = vmatpush1.bf16.msra.mxu0 0
  %466 = vmatprep.subr.bf16.mxu0 0
  %467 = vmatpush1.bf16.msra.mxu0 0
  %468 = vmatprep.subr.bf16.mxu0 0
  %469 = vmatpush1.bf16.msra.mxu0 0
  %470 = vmatprep.subr.bf16.mxu0 0
  %471 = vmatpush1.bf16.msra.mxu0 0
  %472 = vmatprep.subr.bf16.mxu0 0
  %473 = vmatpush1.bf16.msra.mxu0 0
  %474 = vmatprep.mubr.bf16.mxu0 0
  %475 = vmatmul.mubr.bf16.gmra.mrb[0].mxu0 %v440
  %v476 = vpop.f32.mrb[0].mxu0
  %v477 = vadd.f32 0.0, %v476
  %v478 = vpop.f32.mrb[0].mxu0
  %v479 = vpop.f32.mrb[0].mxu0
  %v480 = vadd.f32 0.0, %v479
  %v481 = vpop.f32.mrb[0].mxu0
  %482 = vdwg.mxu0
  %v483 = vadd.f32 %v394, %v477
  %v484 = vadd.f32 %v395, %v480
  %485 = vmatprep.subr.bf16.mxu0 0
  %486 = vmatpush1.bf16.msra.mxu0 %v437
  %487 = vmatprep.subr.bf16.mxu0 0
  %488 = vmatpush1.bf16.msra.mxu0 0
  %489 = vmatprep.subr.bf16.mxu0 0
  %490 = vmatpush1.bf16.msra.mxu0 0
  %491 = vmatprep.subr.bf16.mxu0 0
  %492 = vmatpush1.bf16.msra.mxu0 0
  %493 = vmatprep.subr.bf16.mxu0 0
  %494 = vmatpush1.bf16.msra.mxu0 0
  %495 = vmatprep.subr.bf16.mxu0 0
  %496 = vmatpush1.bf16.msra.mxu0 0
  %497 = vmatprep.subr.bf16.mxu0 0
  %498 = vmatpush1.bf16.msra.mxu0 0
  %499 = vmatprep.subr.bf16.mxu0 0
  %500 = vmatpush1.bf16.msra.mxu0 0
  %501 = vmatprep.subr.bf16.mxu0 0
  %502 = vmatpush1.bf16.msra.mxu0 0
  %503 = vmatprep.subr.bf16.mxu0 0
  %504 = vmatpush1.bf16.msra.mxu0 0
  %505 = vmatprep.subr.bf16.mxu0 0
  %506 = vmatpush1.bf16.msra.mxu0 0
  %507 = vmatprep.subr.bf16.mxu0 0
  %508 = vmatpush1.bf16.msra.mxu0 0
  %509 = vmatprep.subr.bf16.mxu0 0
  %510 = vmatpush1.bf16.msra.mxu0 0
  %511 = vmatprep.subr.bf16.mxu0 0
  %512 = vmatpush1.bf16.msra.mxu0 0
  %513 = vmatprep.subr.bf16.mxu0 0
  %514 = vmatpush1.bf16.msra.mxu0 0
  %515 = vmatprep.subr.bf16.mxu0 0
  %516 = vmatpush1.bf16.msra.mxu0 0
  %517 = vmatprep.mubr.bf16.mxu0 0
  %518 = vmatmul.mubr.bf16.gmra.mrb[0].mxu0 %v440
  %v519 = vpop.f32.mrb[0].mxu0
  %v520 = vadd.f32 0.0, %v519
  %v521 = vpop.f32.mrb[0].mxu0
  %v522 = vpop.f32.mrb[0].mxu0
  %v523 = vadd.f32 0.0, %v522
  %v524 = vpop.f32.mrb[0].mxu0
  %525 = vdwg.mxu0
  %v526 = vpack.c.bf16 %v523, %v520
  %v527 = vpack.c.bf16 %v484, %v483
  %v529 = vsel %vm152, %v526, 0
  %531 = vmatprep.subr.bf16.mxu0 0
  %532 = vmatpush1.bf16.msra.mxu0 %v527
  %533 = vmatprep.subr.bf16.mxu0 0
  %534 = vmatpush1.bf16.msra.mxu0 0
  %535 = vmatprep.subr.bf16.mxu0 0
  %536 = vmatpush1.bf16.msra.mxu0 0
  %537 = vmatprep.subr.bf16.mxu0 0
  %538 = vmatpush1.bf16.msra.mxu0 0
  %539 = vmatprep.subr.bf16.mxu0 0
  %540 = vmatpush1.bf16.msra.mxu0 0
  %541 = vmatprep.subr.bf16.mxu0 0
  %542 = vmatpush1.bf16.msra.mxu0 0
  %543 = vmatprep.subr.bf16.mxu0 0
  %544 = vmatpush1.bf16.msra.mxu0 0
  %545 = vmatprep.subr.bf16.mxu0 0
  %546 = vmatpush1.bf16.msra.mxu0 0
  %547 = vmatprep.subr.bf16.mxu0 0
  %548 = vmatpush1.bf16.msra.mxu0 0
  %549 = vmatprep.subr.bf16.mxu0 0
  %550 = vmatpush1.bf16.msra.mxu0 0
  %551 = vmatprep.subr.bf16.mxu0 0
  %552 = vmatpush1.bf16.msra.mxu0 0
  %553 = vmatprep.subr.bf16.mxu0 0
  %554 = vmatpush1.bf16.msra.mxu0 0
  %555 = vmatprep.subr.bf16.mxu0 0
  %556 = vmatpush1.bf16.msra.mxu0 0
  %557 = vmatprep.subr.bf16.mxu0 0
  %558 = vmatpush1.bf16.msra.mxu0 0
  %559 = vmatprep.subr.bf16.mxu0 0
  %560 = vmatpush1.bf16.msra.mxu0 0
  %561 = vmatprep.subr.bf16.mxu0 0
  %562 = vmatpush1.bf16.msra.mxu0 0
  %563 = vmatprep.mubr.bf16.mxu0 0
  %564 = vmatmul.mubr.bf16.gmra.mrb[0].mxu0 %v529
  %v565 = vpop.f32.mrb[0].mxu0
  %v566 = vadd.f32 0.0, %v565
  %v567 = vpop.f32.mrb[0].mxu0
  %v568 = vpop.f32.mrb[0].mxu0
  %v569 = vadd.f32 0.0, %v568
  %v570 = vpop.f32.mrb[0].mxu0
  %571 = vdwg.mxu0
  %v572 = vadd.f32 %v483, %v566
  %v573 = vadd.f32 %v484, %v569
  %574 = vmatprep.subr.bf16.mxu0 0
  %575 = vmatpush1.bf16.msra.mxu0 %v526
  %576 = vmatprep.subr.bf16.mxu0 0
  %577 = vmatpush1.bf16.msra.mxu0 0
  %578 = vmatprep.subr.bf16.mxu0 0
  %579 = vmatpush1.bf16.msra.mxu0 0
  %580 = vmatprep.subr.bf16.mxu0 0
  %581 = vmatpush1.bf16.msra.mxu0 0
  %582 = vmatprep.subr.bf16.mxu0 0
  %583 = vmatpush1.bf16.msra.mxu0 0
  %584 = vmatprep.subr.bf16.mxu0 0
  %585 = vmatpush1.bf16.msra.mxu0 0
  %586 = vmatprep.subr.bf16.mxu0 0
  %587 = vmatpush1.bf16.msra.mxu0 0
  %588 = vmatprep.subr.bf16.mxu0 0
  %589 = vmatpush1.bf16.msra.mxu0 0
  %590 = vmatprep.subr.bf16.mxu0 0
  %591 = vmatpush1.bf16.msra.mxu0 0
  %592 = vmatprep.subr.bf16.mxu0 0
  %593 = vmatpush1.bf16.msra.mxu0 0
  %594 = vmatprep.subr.bf16.mxu0 0
  %595 = vmatpush1.bf16.msra.mxu0 0
  %596 = vmatprep.subr.bf16.mxu0 0
  %597 = vmatpush1.bf16.msra.mxu0 0
  %598 = vmatprep.subr.bf16.mxu0 0
  %599 = vmatpush1.bf16.msra.mxu0 0
  %600 = vmatprep.subr.bf16.mxu0 0
  %601 = vmatpush1.bf16.msra.mxu0 0
  %602 = vmatprep.subr.bf16.mxu0 0
  %603 = vmatpush1.bf16.msra.mxu0 0
  %604 = vmatprep.subr.bf16.mxu0 0
  %605 = vmatpush1.bf16.msra.mxu0 0
  %606 = vmatprep.mubr.bf16.mxu0 0
  %607 = vmatmul.mubr.bf16.gmra.mrb[0].mxu0 %v529
  %v608 = vpop.f32.mrb[0].mxu0
  %v609 = vadd.f32 0.0, %v608
  %v610 = vpop.f32.mrb[0].mxu0
  %v611 = vpop.f32.mrb[0].mxu0
  %v612 = vadd.f32 0.0, %v611
  %v613 = vpop.f32.mrb[0].mxu0
  %614 = vdwg.mxu0
  %v615 = vpack.c.bf16 %v612, %v609
  %v616 = vpack.c.bf16 %v573, %v572
  %v618 = vsel %vm152, %v615, 0
  %620 = vmatprep.subr.bf16.mxu0 0
  %621 = vmatpush1.bf16.msra.mxu0 %v616
  %622 = vmatprep.subr.bf16.mxu0 0
  %623 = vmatpush1.bf16.msra.mxu0 0
  %624 = vmatprep.subr.bf16.mxu0 0
  %625 = vmatpush1.bf16.msra.mxu0 0
  %626 = vmatprep.subr.bf16.mxu0 0
  %627 = vmatpush1.bf16.msra.mxu0 0
  %628 = vmatprep.subr.bf16.mxu0 0
  %629 = vmatpush1.bf16.msra.mxu0 0
  %630 = vmatprep.subr.bf16.mxu0 0
  %631 = vmatpush1.bf16.msra.mxu0 0
  %632 = vmatprep.subr.bf16.mxu0 0
  %633 = vmatpush1.bf16.msra.mxu0 0
  %634 = vmatprep.subr.bf16.mxu0 0
  %635 = vmatpush1.bf16.msra.mxu0 0
  %636 = vmatprep.subr.bf16.mxu0 0
  %637 = vmatpush1.bf16.msra.mxu0 0
  %638 = vmatprep.subr.bf16.mxu0 0
  %639 = vmatpush1.bf16.msra.mxu0 0
  %640 = vmatprep.subr.bf16.mxu0 0
  %641 = vmatpush1.bf16.msra.mxu0 0
  %642 = vmatprep.subr.bf16.mxu0 0
  %643 = vmatpush1.bf16.msra.mxu0 0
  %644 = vmatprep.subr.bf16.mxu0 0
  %645 = vmatpush1.bf16.msra.mxu0 0
  %646 = vmatprep.subr.bf16.mxu0 0
  %647 = vmatpush1.bf16.msra.mxu0 0
  %648 = vmatprep.subr.bf16.mxu0 0
  %649 = vmatpush1.bf16.msra.mxu0 0
  %650 = vmatprep.subr.bf16.mxu0 0
  %651 = vmatpush1.bf16.msra.mxu0 0
  %652 = vmatprep.mubr.bf16.mxu0 0
  %653 = vmatmul.mubr.bf16.gmra.mrb[0].mxu0 %v618
  %v654 = vpop.f32.mrb[0].mxu0
  %v655 = vadd.f32 0.0, %v654
  %v656 = vpop.f32.mrb[0].mxu0
  %v657 = vpop.f32.mrb[0].mxu0
  %v658 = vadd.f32 0.0, %v657
  %v659 = vpop.f32.mrb[0].mxu0
  %660 = vdwg.mxu0
  %v661 = vadd.f32 %v572, %v655
  %v662 = vadd.f32 %v573, %v658
  %v664 = vsel %vm152, %v253, 0
  %v667 = vsel %vm152, %v254, 0
  %669 = vmatprep.subr.mxu0 0.0
  %670 = vmatpush1.msra.mxu0 %v661
  %671 = vmatprep.subr.mxu0 0.0
  %672 = vmatpush1.msra.mxu0 %v662
  %673 = vmatprep.subr.mxu0 0.0
  %674 = vmatpush1.msra.mxu0 0.0
  %675 = vmatprep.subr.mxu0 0.0
  %676 = vmatpush1.msra.mxu0 0.0
  %677 = vmatprep.subr.mxu0 0.0
  %678 = vmatpush1.msra.mxu0 0.0
  %679 = vmatprep.subr.mxu0 0.0
  %680 = vmatpush1.msra.mxu0 0.0
  %681 = vmatprep.subr.mxu0 0.0
  %682 = vmatpush1.msra.mxu0 0.0
  %683 = vmatprep.subr.mxu0 0.0
  %684 = vmatpush1.msra.mxu0 0.0
  %685 = vmatprep.subr.mxu0 0.0
  %686 = vmatpush1.msra.mxu0 0.0
  %687 = vmatprep.subr.mxu0 0.0
  %688 = vmatpush1.msra.mxu0 0.0
  %689 = vmatprep.subr.mxu0 0.0
  %690 = vmatpush1.msra.mxu0 0.0
  %691 = vmatprep.subr.mxu0 0.0
  %692 = vmatpush1.msra.mxu0 0.0
  %693 = vmatprep.subr.mxu0 0.0
  %694 = vmatpush1.msra.mxu0 0.0
  %695 = vmatprep.subr.mxu0 0.0
  %696 = vmatpush1.msra.mxu0 0.0
  %697 = vmatprep.subr.mxu0 0.0
  %698 = vmatpush1.msra.mxu0 0.0
  %699 = vmatprep.subr.mxu0 0.0
  %700 = vmatpush1.msra.mxu0 0.0
  %701 = vmatprep.subr.mxu0 0.0
  %702 = vmatpush1.msra.mxu0 0.0
  %703 = vmatprep.subr.mxu0 0.0
  %704 = vmatpush1.msra.mxu0 0.0
  %705 = vmatprep.subr.mxu0 0.0
  %706 = vmatpush1.msra.mxu0 0.0
  %707 = vmatprep.subr.mxu0 0.0
  %708 = vmatpush1.msra.mxu0 0.0
  %709 = vmatprep.subr.mxu0 0.0
  %710 = vmatpush1.msra.mxu0 0.0
  %711 = vmatprep.subr.mxu0 0.0
  %712 = vmatpush1.msra.mxu0 0.0
  %713 = vmatprep.subr.mxu0 0.0
  %714 = vmatpush1.msra.mxu0 0.0
  %715 = vmatprep.subr.mxu0 0.0
  %716 = vmatpush1.msra.mxu0 0.0
  %717 = vmatprep.subr.mxu0 0.0
  %718 = vmatpush1.msra.mxu0 0.0
  %719 = vmatprep.subr.mxu0 0.0
  %720 = vmatpush1.msra.mxu0 0.0
  %721 = vmatprep.subr.mxu0 0.0
  %722 = vmatpush1.msra.mxu0 0.0
  %723 = vmatprep.subr.mxu0 0.0
  %724 = vmatpush1.msra.mxu0 0.0
  %725 = vmatprep.subr.mxu0 0.0
  %726 = vmatpush1.msra.mxu0 0.0
  %727 = vmatprep.subr.mxu0 0.0
  %728 = vmatpush1.msra.mxu0 0.0
  %729 = vmatprep.subr.mxu0 0.0
  %730 = vmatpush1.msra.mxu0 0.0
  %731 = vmatprep.subr.mxu0 0.0
  %732 = vmatpush1.msra.mxu0 0.0
  %733 = vmatprep.mubr.f32.mxu0 0.0
  %734 = vmatmul.mubr.f32.gmra.mrb[0].mxu0 %v664
  %v735 = vpop.f32.mrb[0].mxu0
  %v736 = vadd.f32 0.0, %v735
  %v737 = vpop.f32.mrb[0].mxu0
  %738 = vmatprep.mubr.f32.mxu0 0.0
  %739 = vmatmul.mubr.f32.gmra.mrb[0].mxu0 %v667
  %v740 = vpop.f32.mrb[0].mxu0
  %v741 = vadd.f32 0.0, %v740
  %v742 = vpop.f32.mrb[0].mxu0
  %743 = vdwg.mxu0
  %v744 = vadd.f32 %v257, %v736
  %v745 = vadd.f32 %v258, %v741
  %v746 = vmul.f32 %v255, 0.5
  %v747 = vmul.f32 %v256, 0.5
  %v748 = vmul.f32 %v746, %v744
  %v749 = vmul.f32 %v747, %v745
  %v751 = vsel %vm60, %v748, 0
  %v754 = vsel %vm60, %v749, 0
  %756 = vmatprep.subr.mxu0 0.0
  %757 = vmatpush1.xpose.msra.mxu0 %v751
  %758 = vmatprep.subr.mxu0 0.0
  %759 = vmatpush1.xpose.msra.mxu0 %v754
  %760 = vmatprep.subr.mxu0 0.0
  %761 = vmatpush1.xpose.msra.mxu0 0.0
  %762 = vmatprep.subr.mxu0 0.0
  %763 = vmatpush1.xpose.msra.mxu0 0.0
  %764 = vmatprep.subr.mxu0 0.0
  %765 = vmatpush1.xpose.msra.mxu0 0.0
  %766 = vmatprep.subr.mxu0 0.0
  %767 = vmatpush1.xpose.msra.mxu0 0.0
  %768 = vmatprep.subr.mxu0 0.0
  %769 = vmatpush1.xpose.msra.mxu0 0.0
  %770 = vmatprep.subr.mxu0 0.0
  %771 = vmatpush1.xpose.msra.mxu0 0.0
  %772 = vmatprep.subr.mxu0 0.0
  %773 = vmatpush1.xpose.msra.mxu0 0.0
  %774 = vmatprep.subr.mxu0 0.0
  %775 = vmatpush1.xpose.msra.mxu0 0.0
  %776 = vmatprep.subr.mxu0 0.0
  %777 = vmatpush1.xpose.msra.mxu0 0.0
  %778 = vmatprep.subr.mxu0 0.0
  %779 = vmatpush1.xpose.msra.mxu0 0.0
  %780 = vmatprep.subr.mxu0 0.0
  %781 = vmatpush1.xpose.msra.mxu0 0.0
  %782 = vmatprep.subr.mxu0 0.0
  %783 = vmatpush1.xpose.msra.mxu0 0.0
  %784 = vmatprep.subr.mxu0 0.0
  %785 = vmatpush1.xpose.msra.mxu0 0.0
  %786 = vmatprep.subr.mxu0 0.0
  %787 = vmatpush1.xpose.msra.mxu0 0.0
  %788 = vmatprep.subr.mxu0 0.0
  %789 = vmatpush1.xpose.msra.mxu0 0.0
  %790 = vmatprep.subr.mxu0 0.0
  %791 = vmatpush1.xpose.msra.mxu0 0.0
  %792 = vmatprep.subr.mxu0 0.0
  %793 = vmatpush1.xpose.msra.mxu0 0.0
  %794 = vmatprep.subr.mxu0 0.0
  %795 = vmatpush1.xpose.msra.mxu0 0.0
  %796 = vmatprep.subr.mxu0 0.0
  %797 = vmatpush1.xpose.msra.mxu0 0.0
  %798 = vmatprep.subr.mxu0 0.0
  %799 = vmatpush1.xpose.msra.mxu0 0.0
  %800 = vmatprep.subr.mxu0 0.0
  %801 = vmatpush1.xpose.msra.mxu0 0.0
  %802 = vmatprep.subr.mxu0 0.0
  %803 = vmatpush1.xpose.msra.mxu0 0.0
  %804 = vmatprep.subr.mxu0 0.0
  %805 = vmatpush1.xpose.msra.mxu0 0.0
  %806 = vmatprep.subr.mxu0 0.0
  %807 = vmatpush1.xpose.msra.mxu0 0.0
  %808 = vmatprep.subr.mxu0 0.0
  %809 = vmatpush1.xpose.msra.mxu0 0.0
  %810 = vmatprep.subr.mxu0 0.0
  %811 = vmatpush1.xpose.msra.mxu0 0.0
  %812 = vmatprep.subr.mxu0 0.0
  %813 = vmatpush1.xpose.msra.mxu0 0.0
  %814 = vmatprep.subr.mxu0 0.0
  %815 = vmatpush1.xpose.msra.mxu0 0.0
  %816 = vmatprep.subr.mxu0 0.0
  %817 = vmatpush1.xpose.msra.mxu0 0.0
  %818 = vmatprep.subr.mxu0 0.0
  %819 = vmatpush1.xpose.msra.mxu0 0.0
  %820 = vmatprep.mubr.f32.mxu0 0.0
  %821 = vmatmul.mubr.f32.gmra.mrb[0].mxu0 %v751
  %v822 = vpop.f32.mrb[0].mxu0
  %v823 = vadd.f32 0.0, %v822
  %v824 = vpop.f32.mrb[0].mxu0
  %825 = vmatprep.mubr.f32.mxu0 0.0
  %826 = vmatmul.mubr.f32.gmra.mrb[0].mxu0 %v754
  %v827 = vpop.f32.mrb[0].mxu0
  %v828 = vadd.f32 0.0, %v827
  %v829 = vpop.f32.mrb[0].mxu0
  %830 = vdwg.mxu0
  %v831 = vmul.f32 %v748, %v748
  %v832 = vmul.f32 %v749, %v749
  %v833 = vsel %vm60, %v831, 0.0
  %834 = vadd.xlane.f32.xlu0 %v833
  %v835 = vpop.xlane.xlu0 %834
  %v836 = vsel %vm60, %v832, 0.0
  %837 = vadd.xlane.f32.xlu0 %v836
  %v838 = vpop.xlane.xlu0 %837
  %v839 = vsel %vm58, %v823, 0.0
  %v840 = vsel %vm59, %v828, 0.0
  %v841 = vsel %vm152, %v839, 0.0
  %v842 = vsel %vm152, %v840, 0.0
  %v843 = vadd.f32 %v841, %v842
  %v844 = vrot.slane %v843, 4
  %v845 = vadd.f32 %v843, %v844
  %v846 = vrot.slane %v845, 2
  %v847 = vadd.f32 %v845, %v846
  %v848 = vrot.slane %v847, 1
  %v849 = vadd.f32 %v847, %v848
  %v850 = vadd.f32 %v835, %v849
  %v851 = vadd.f32 %v838, %v849
  %v852 = vmul.f32 %v823, 2.0
  %v853 = vmul.f32 %v828, 2.0
  %v854 = vsub.f32 %v850, %v852
  %v855 = vsub.f32 %v851, %v853
  %v856 = vmul.f32 %v854, 0.17677669
  %v857 = vmul.f32 %v855, 0.17677669
  %v858 = vmax.f32 %v856, 0.0
  %v859 = vmax.f32 %v857, 0.0
  %v860 = vsel %vm58, 0.0, %v858
  %v861 = vsel %vm59, 0.0, %v859
  %vm862 = vcmp.ne.f32.partialorder %v860, 0.0
  %vm863 = vcmp.ne.f32.partialorder %v861, 0.0
  %v864 = vsel %vm862, 1, 0
  %v865 = vsel %vm863, 1, 0
  %v866 = vcvt.s32.f32 %v864
  %v867 = vcvt.s32.f32 %v865
  %v868 = vsel %vm152, %v866, 0.0
  %869 = vadd.xlane.f32.xlu0 %v868
  %v870 = vpop.xlane.xlu0 %869
  %v871 = vsel %vm152, %v867, 0.0
  %872 = vadd.xlane.f32.xlu0 %v871
  %v873 = vpop.xlane.xlu0 %872
  %v874 = vadd.f32 %v870, %v873
  %v875 = vrot.slane %v874, 4
  %v876 = vadd.f32 %v874, %v875
  %v877 = vrot.slane %v876, 2
  %v878 = vadd.f32 %v876, %v877
  %v879 = vrot.slane %v878, 1
  %v880 = vadd.f32 %v878, %v879
  %v881 = vsel %vm152, %v860, 0.0
  %882 = vadd.xlane.f32.xlu0 %v881
  %v883 = vpop.xlane.xlu0 %882
  %v884 = vsel %vm152, %v861, 0.0
  %885 = vadd.xlane.f32.xlu0 %v884
  %v886 = vpop.xlane.xlu0 %885
  %v887 = vadd.f32 %v883, %v886
  %v888 = vrot.slane %v887, 4
  %v889 = vadd.f32 %v887, %v888
  %v890 = vrot.slane %v889, 2
  %v891 = vadd.f32 %v889, %v890
  %v892 = vrot.slane %v891, 1
  %v893 = vadd.f32 %v891, %v892
  %v894 = vmul.f32 %v860, %v860
  %v895 = vmul.f32 %v861, %v861
  %v896 = vsel %vm152, %v894, 0.0
  %897 = vadd.xlane.f32.xlu0 %v896
  %v898 = vpop.xlane.xlu0 %897
  %v899 = vsel %vm152, %v895, 0.0
  %900 = vadd.xlane.f32.xlu0 %v899
  %v901 = vpop.xlane.xlu0 %900
  %v902 = vadd.f32 %v898, %v901
  %v903 = vrot.slane %v902, 4
  %v904 = vadd.f32 %v902, %v903
  %v905 = vrot.slane %v904, 2
  %v906 = vadd.f32 %v904, %v905
  %v907 = vrot.slane %v906, 1
  %v908 = vadd.f32 %v906, %v907
  %v909 = vmul.f32 %v893, %v893
  %v910 = vrcp.pop %v880
  %v911 = vmul.f32 %v909, %v910
  %v912 = vsub.f32 %v908, %v911
  %v913 = vsub.f32 %v880, 1.0
  %v914 = vrcp.pop %v913
  %v915 = vmul.f32 %v912, %v914
  %v916 = vrsqrt.pop %v915
  %v917 = vmul.f32 %v860, %v916
  %v918 = vmul.f32 %v861, %v916
  %v919 = vsub.f32 0.0, %v917
  %v920 = vsub.f32 0.0, %v918
  %v921 = vmul.f32 %v919, 1.442695
  %v922 = vpow.pop %v921
  %v923 = vmul.f32 %v920, 1.442695
  %v924 = vpow.pop %v923
  %v925 = vsel %vm58, 0.0, %v922
  %v926 = vsel %vm59, 0.0, %v924
  %v927 = vsel %vm152, %v925, 0.0
  %928 = vadd.xlane.f32.xlu0 %v927
  %v929 = vpop.xlane.xlu0 %928
  %v930 = vsel %vm152, %v926, 0.0
  %931 = vadd.xlane.f32.xlu0 %v930
  %v932 = vpop.xlane.xlu0 %931
  %v933 = vadd.f32 %v929, 0.0001
  %v934 = vadd.f32 %v932, 0.0001
  %v935 = vrsqrt.pop %v933
  %v936 = vrsqrt.pop %v934
  %v937 = vmul.f32 %v935, %v935
  %v938 = vmul.f32 %v936, %v936
  %v939 = vmul.f32 %v937, 0.5
  %v940 = vmul.f32 %v938, 0.5
  %v941 = vmul.f32 %v939, %v925
  %v942 = vmul.f32 %v940, %v926
  %v943 = vmul.f32 %v934, %v936
  %v944 = vmul.f32 %v56, %v935
  %v945 = vmul.f32 %v57, %v936
  %v946 = vpack.c.bf16 %v942, %v941
  %v947 = vpack.c.bf16 %v945, %v944
  %v949 = vsel %vm152, %v946, 0
  %951 = vmatprep.subr.bf16.mxu0 0
  %952 = vmatpush1.bf16.msra.mxu0 %v947
  %953 = vmatprep.subr.bf16.mxu0 0
  %954 = vmatpush1.bf16.msra.mxu0 0
  %955 = vmatprep.subr.bf16.mxu0 0
  %956 = vmatpush1.bf16.msra.mxu0 0
  %957 = vmatprep.subr.bf16.mxu0 0
  %958 = vmatpush1.bf16.msra.mxu0 0
  %959 = vmatprep.subr.bf16.mxu0 0
  %960 = vmatpush1.bf16.msra.mxu0 0
  %961 = vmatprep.subr.bf16.mxu0 0
  %962 = vmatpush1.bf16.msra.mxu0 0
  %963 = vmatprep.subr.bf16.mxu0 0
  %964 = vmatpush1.bf16.msra.mxu0 0
  %965 = vmatprep.subr.bf16.mxu0 0
  %966 = vmatpush1.bf16.msra.mxu0 0
  %967 = vmatprep.subr.bf16.mxu0 0
  %968 = vmatpush1.bf16.msra.mxu0 0
  %969 = vmatprep.subr.bf16.mxu0 0
  %970 = vmatpush1.bf16.msra.mxu0 0
  %971 = vmatprep.subr.bf16.mxu0 0
  %972 = vmatpush1.bf16.msra.mxu0 0
  %973 = vmatprep.subr.bf16.mxu0 0
  %974 = vmatpush1.bf16.msra.mxu0 0
  %975 = vmatprep.subr.bf16.mxu0 0
  %976 = vmatpush1.bf16.msra.mxu0 0
  %977 = vmatprep.subr.bf16.mxu0 0
  %978 = vmatpush1.bf16.msra.mxu0 0
  %979 = vmatprep.subr.bf16.mxu0 0
  %980 = vmatpush1.bf16.msra.mxu0 0
  %981 = vmatprep.subr.bf16.mxu0 0
  %982 = vmatpush1.bf16.msra.mxu0 0
  %983 = vmatprep.mubr.bf16.mxu0 0
  %984 = vmatmul.mubr.bf16.gmra.mrb[0].mxu0 %v949
  %v985 = vpop.f32.mrb[0].mxu0
  %v986 = vadd.f32 0.0, %v985
  %v987 = vpop.f32.mrb[0].mxu0
  %v988 = vpop.f32.mrb[0].mxu0
  %v989 = vadd.f32 0.0, %v988
  %v990 = vpop.f32.mrb[0].mxu0
  %991 = vdwg.mxu0
  %v992 = vadd.f32 %v944, %v986
  %v993 = vadd.f32 %v945, %v989
  %994 = vmatprep.subr.bf16.mxu0 0
  %995 = vmatpush1.bf16.msra.mxu0 %v946
  %996 = vmatprep.subr.bf16.mxu0 0
  %997 = vmatpush1.bf16.msra.mxu0 0
  %998 = vmatprep.subr.bf16.mxu0 0
  %999 = vmatpush1.bf16.msra.mxu0 0
  %1000 = vmatprep.subr.bf16.mxu0 0
  %1001 = vmatpush1.bf16.msra.mxu0 0
  %1002 = vmatprep.subr.bf16.mxu0 0
  %1003 = vmatpush1.bf16.msra.mxu0 0
  %1004 = vmatprep.subr.bf16.mxu0 0
  %1005 = vmatpush1.bf16.msra.mxu0 0
  %1006 = vmatprep.subr.bf16.mxu0 0
  %1007 = vmatpush1.bf16.msra.mxu0 0
  %1008 = vmatprep.subr.bf16.mxu0 0
  %1009 = vmatpush1.bf16.msra.mxu0 0
  %1010 = vmatprep.subr.bf16.mxu0 0
  %1011 = vmatpush1.bf16.msra.mxu0 0
  %1012 = vmatprep.subr.bf16.mxu0 0
  %1013 = vmatpush1.bf16.msra.mxu0 0
  %1014 = vmatprep.subr.bf16.mxu0 0
  %1015 = vmatpush1.bf16.msra.mxu0 0
  %1016 = vmatprep.subr.bf16.mxu0 0
  %1017 = vmatpush1.bf16.msra.mxu0 0
  %1018 = vmatprep.subr.bf16.mxu0 0
  %1019 = vmatpush1.bf16.msra.mxu0 0
  %1020 = vmatprep.subr.bf16.mxu0 0
  %1021 = vmatpush1.bf16.msra.mxu0 0
  %1022 = vmatprep.subr.bf16.mxu0 0
  %1023 = vmatpush1.bf16.msra.mxu0 0
  %1024 = vmatprep.subr.bf16.mxu0 0
  %1025 = vmatpush1.bf16.msra.mxu0 0
  %1026 = vmatprep.mubr.bf16.mxu0 0
  %1027 = vmatmul.mubr.bf16.gmra.mrb[0].mxu0 %v949
  %v1028 = vpop.f32.mrb[0].mxu0
  %v1029 = vadd.f32 0.0, %v1028
  %v1030 = vpop.f32.mrb[0].mxu0
  %v1031 = vpop.f32.mrb[0].mxu0
  %v1032 = vadd.f32 0.0, %v1031
  %v1033 = vpop.f32.mrb[0].mxu0
  %1034 = vdwg.mxu0
  %v1035 = vpack.c.bf16 %v1032, %v1029
  %v1036 = vpack.c.bf16 %v993, %v992
  %v1038 = vsel %vm152, %v1035, 0
  %1040 = vmatprep.subr.bf16.mxu0 0
  %1041 = vmatpush1.bf16.msra.mxu0 %v1036
  %1042 = vmatprep.subr.bf16.mxu0 0
  %1043 = vmatpush1.bf16.msra.mxu0 0
  %1044 = vmatprep.subr.bf16.mxu0 0
  %1045 = vmatpush1.bf16.msra.mxu0 0
  %1046 = vmatprep.subr.bf16.mxu0 0
  %1047 = vmatpush1.bf16.msra.mxu0 0
  %1048 = vmatprep.subr.bf16.mxu0 0
  %1049 = vmatpush1.bf16.msra.mxu0 0
  %1050 = vmatprep.subr.bf16.mxu0 0
  %1051 = vmatpush1.bf16.msra.mxu0 0
  %1052 = vmatprep.subr.bf16.mxu0 0
  %1053 = vmatpush1.bf16.msra.mxu0 0
  %1054 = vmatprep.subr.bf16.mxu0 0
  %1055 = vmatpush1.bf16.msra.mxu0 0
  %1056 = vmatprep.subr.bf16.mxu0 0
  %1057 = vmatpush1.bf16.msra.mxu0 0
  %1058 = vmatprep.subr.bf16.mxu0 0
  %1059 = vmatpush1.bf16.msra.mxu0 0
  %1060 = vmatprep.subr.bf16.mxu0 0
  %1061 = vmatpush1.bf16.msra.mxu0 0
  %1062 = vmatprep.subr.bf16.mxu0 0
  %1063 = vmatpush1.bf16.msra.mxu0 0
  %1064 = vmatprep.subr.bf16.mxu0 0
  %1065 = vmatpush1.bf16.msra.mxu0 0
  %1066 = vmatprep.subr.bf16.mxu0 0
  %1067 = vmatpush1.bf16.msra.mxu0 0
  %1068 = vmatprep.subr.bf16.mxu0 0
  %1069 = vmatpush1.bf16.msra.mxu0 0
  %1070 = vmatprep.subr.bf16.mxu0 0
  %1071 = vmatpush1.bf16.msra.mxu0 0
  %1072 = vmatprep.mubr.bf16.mxu0 0
  %1073 = vmatmul.mubr.bf16.gmra.mrb[0].mxu0 %v1038
  %v1074 = vpop.f32.mrb[0].mxu0
  %v1075 = vadd.f32 0.0, %v1074
  %v1076 = vpop.f32.mrb[0].mxu0
  %v1077 = vpop.f32.mrb[0].mxu0
  %v1078 = vadd.f32 0.0, %v1077
  %v1079 = vpop.f32.mrb[0].mxu0
  %1080 = vdwg.mxu0
  %v1081 = vadd.f32 %v992, %v1075
  %v1082 = vadd.f32 %v993, %v1078
  %1083 = vmatprep.subr.bf16.mxu0 0
  %1084 = vmatpush1.bf16.msra.mxu0 %v1035
  %1085 = vmatprep.subr.bf16.mxu0 0
  %1086 = vmatpush1.bf16.msra.mxu0 0
  %1087 = vmatprep.subr.bf16.mxu0 0
  %1088 = vmatpush1.bf16.msra.mxu0 0
  %1089 = vmatprep.subr.bf16.mxu0 0
  %1090 = vmatpush1.bf16.msra.mxu0 0
  %1091 = vmatprep.subr.bf16.mxu0 0
  %1092 = vmatpush1.bf16.msra.mxu0 0
  %1093 = vmatprep.subr.bf16.mxu0 0
  %1094 = vmatpush1.bf16.msra.mxu0 0
  %1095 = vmatprep.subr.bf16.mxu0 0
  %1096 = vmatpush1.bf16.msra.mxu0 0
  %1097 = vmatprep.subr.bf16.mxu0 0
  %1098 = vmatpush1.bf16.msra.mxu0 0
  %1099 = vmatprep.subr.bf16.mxu0 0
  %1100 = vmatpush1.bf16.msra.mxu0 0
  %1101 = vmatprep.subr.bf16.mxu0 0
  %1102 = vmatpush1.bf16.msra.mxu0 0
  %1103 = vmatprep.subr.bf16.mxu0 0
  %1104 = vmatpush1.bf16.msra.mxu0 0
  %1105 = vmatprep.subr.bf16.mxu0 0
  %1106 = vmatpush1.bf16.msra.mxu0 0
  %1107 = vmatprep.subr.bf16.mxu0 0
  %1108 = vmatpush1.bf16.msra.mxu0 0
  %1109 = vmatprep.subr.bf16.mxu0 0
  %1110 = vmatpush1.bf16.msra.mxu0 0
  %1111 = vmatprep.subr.bf16.mxu0 0
  %1112 = vmatpush1.bf16.msra.mxu0 0
  %1113 = vmatprep.subr.bf16.mxu0 0
  %1114 = vmatpush1.bf16.msra.mxu0 0
  %1115 = vmatprep.mubr.bf16.mxu0 0
  %1116 = vmatmul.mubr.bf16.gmra.mrb[0].mxu0 %v1038
  %v1117 = vpop.f32.mrb[0].mxu0
  %v1118 = vadd.f32 0.0, %v1117
  %v1119 = vpop.f32.mrb[0].mxu0
  %v1120 = vpop.f32.mrb[0].mxu0
  %v1121 = vadd.f32 0.0, %v1120
  %v1122 = vpop.f32.mrb[0].mxu0
  %1123 = vdwg.mxu0
  %v1124 = vpack.c.bf16 %v1121, %v1118
  %v1125 = vpack.c.bf16 %v1082, %v1081
  %v1127 = vsel %vm152, %v1124, 0
  %1129 = vmatprep.subr.bf16.mxu0 0
  %1130 = vmatpush1.bf16.msra.mxu0 %v1125
  %1131 = vmatprep.subr.bf16.mxu0 0
  %1132 = vmatpush1.bf16.msra.mxu0 0
  %1133 = vmatprep.subr.bf16.mxu0 0
  %1134 = vmatpush1.bf16.msra.mxu0 0
  %1135 = vmatprep.subr.bf16.mxu0 0
  %1136 = vmatpush1.bf16.msra.mxu0 0
  %1137 = vmatprep.subr.bf16.mxu0 0
  %1138 = vmatpush1.bf16.msra.mxu0 0
  %1139 = vmatprep.subr.bf16.mxu0 0
  %1140 = vmatpush1.bf16.msra.mxu0 0
  %1141 = vmatprep.subr.bf16.mxu0 0
  %1142 = vmatpush1.bf16.msra.mxu0 0
  %1143 = vmatprep.subr.bf16.mxu0 0
  %1144 = vmatpush1.bf16.msra.mxu0 0
  %1145 = vmatprep.subr.bf16.mxu0 0
  %1146 = vmatpush1.bf16.msra.mxu0 0
  %1147 = vmatprep.subr.bf16.mxu0 0
  %1148 = vmatpush1.bf16.msra.mxu0 0
  %1149 = vmatprep.subr.bf16.mxu0 0
  %1150 = vmatpush1.bf16.msra.mxu0 0
  %1151 = vmatprep.subr.bf16.mxu0 0
  %1152 = vmatpush1.bf16.msra.mxu0 0
  %1153 = vmatprep.subr.bf16.mxu0 0
  %1154 = vmatpush1.bf16.msra.mxu0 0
  %1155 = vmatprep.subr.bf16.mxu0 0
  %1156 = vmatpush1.bf16.msra.mxu0 0
  %1157 = vmatprep.subr.bf16.mxu0 0
  %1158 = vmatpush1.bf16.msra.mxu0 0
  %1159 = vmatprep.subr.bf16.mxu0 0
  %1160 = vmatpush1.bf16.msra.mxu0 0
  %1161 = vmatprep.mubr.bf16.mxu0 0
  %1162 = vmatmul.mubr.bf16.gmra.mrb[0].mxu0 %v1127
  %v1163 = vpop.f32.mrb[0].mxu0
  %v1164 = vadd.f32 0.0, %v1163
  %v1165 = vpop.f32.mrb[0].mxu0
  %v1166 = vpop.f32.mrb[0].mxu0
  %v1167 = vadd.f32 0.0, %v1166
  %v1168 = vpop.f32.mrb[0].mxu0
  %1169 = vdwg.mxu0
  %v1170 = vadd.f32 %v1081, %v1164
  %v1171 = vadd.f32 %v1082, %v1167
  %1172 = vmatprep.subr.bf16.mxu0 0
  %1173 = vmatpush1.bf16.msra.mxu0 %v1124
  %1174 = vmatprep.subr.bf16.mxu0 0
  %1175 = vmatpush1.bf16.msra.mxu0 0
  %1176 = vmatprep.subr.bf16.mxu0 0
  %1177 = vmatpush1.bf16.msra.mxu0 0
  %1178 = vmatprep.subr.bf16.mxu0 0
  %1179 = vmatpush1.bf16.msra.mxu0 0
  %1180 = vmatprep.subr.bf16.mxu0 0
  %1181 = vmatpush1.bf16.msra.mxu0 0
  %1182 = vmatprep.subr.bf16.mxu0 0
  %1183 = vmatpush1.bf16.msra.mxu0 0
  %1184 = vmatprep.subr.bf16.mxu0 0
  %1185 = vmatpush1.bf16.msra.mxu0 0
  %1186 = vmatprep.subr.bf16.mxu0 0
  %1187 = vmatpush1.bf16.msra.mxu0 0
  %1188 = vmatprep.subr.bf16.mxu0 0
  %1189 = vmatpush1.bf16.msra.mxu0 0
  %1190 = vmatprep.subr.bf16.mxu0 0
  %1191 = vmatpush1.bf16.msra.mxu0 0
  %1192 = vmatprep.subr.bf16.mxu0 0
  %1193 = vmatpush1.bf16.msra.mxu0 0
  %1194 = vmatprep.subr.bf16.mxu0 0
  %1195 = vmatpush1.bf16.msra.mxu0 0
  %1196 = vmatprep.subr.bf16.mxu0 0
  %1197 = vmatpush1.bf16.msra.mxu0 0
  %1198 = vmatprep.subr.bf16.mxu0 0
  %1199 = vmatpush1.bf16.msra.mxu0 0
  %1200 = vmatprep.subr.bf16.mxu0 0
  %1201 = vmatpush1.bf16.msra.mxu0 0
  %1202 = vmatprep.subr.bf16.mxu0 0
  %1203 = vmatpush1.bf16.msra.mxu0 0
  %1204 = vmatprep.mubr.bf16.mxu0 0
  %1205 = vmatmul.mubr.bf16.gmra.mrb[0].mxu0 %v1127
  %v1206 = vpop.f32.mrb[0].mxu0
  %v1207 = vadd.f32 0.0, %v1206
  %v1208 = vpop.f32.mrb[0].mxu0
  %v1209 = vpop.f32.mrb[0].mxu0
  %v1210 = vadd.f32 0.0, %v1209
  %v1211 = vpop.f32.mrb[0].mxu0
  %1212 = vdwg.mxu0
  %v1213 = vpack.c.bf16 %v1210, %v1207
  %v1214 = vpack.c.bf16 %v1171, %v1170
  %v1216 = vsel %vm152, %v1213, 0
  %1218 = vmatprep.subr.bf16.mxu0 0
  %1219 = vmatpush1.bf16.msra.mxu0 %v1214
  %1220 = vmatprep.subr.bf16.mxu0 0
  %1221 = vmatpush1.bf16.msra.mxu0 0
  %1222 = vmatprep.subr.bf16.mxu0 0
  %1223 = vmatpush1.bf16.msra.mxu0 0
  %1224 = vmatprep.subr.bf16.mxu0 0
  %1225 = vmatpush1.bf16.msra.mxu0 0
  %1226 = vmatprep.subr.bf16.mxu0 0
  %1227 = vmatpush1.bf16.msra.mxu0 0
  %1228 = vmatprep.subr.bf16.mxu0 0
  %1229 = vmatpush1.bf16.msra.mxu0 0
  %1230 = vmatprep.subr.bf16.mxu0 0
  %1231 = vmatpush1.bf16.msra.mxu0 0
  %1232 = vmatprep.subr.bf16.mxu0 0
  %1233 = vmatpush1.bf16.msra.mxu0 0
  %1234 = vmatprep.subr.bf16.mxu0 0
  %1235 = vmatpush1.bf16.msra.mxu0 0
  %1236 = vmatprep.subr.bf16.mxu0 0
  %1237 = vmatpush1.bf16.msra.mxu0 0
  %1238 = vmatprep.subr.bf16.mxu0 0
  %1239 = vmatpush1.bf16.msra.mxu0 0
  %1240 = vmatprep.subr.bf16.mxu0 0
  %1241 = vmatpush1.bf16.msra.mxu0 0
  %1242 = vmatprep.subr.bf16.mxu0 0
  %1243 = vmatpush1.bf16.msra.mxu0 0
  %1244 = vmatprep.subr.bf16.mxu0 0
  %1245 = vmatpush1.bf16.msra.mxu0 0
  %1246 = vmatprep.subr.bf16.mxu0 0
  %1247 = vmatpush1.bf16.msra.mxu0 0
  %1248 = vmatprep.subr.bf16.mxu0 0
  %1249 = vmatpush1.bf16.msra.mxu0 0
  %1250 = vmatprep.mubr.bf16.mxu0 0
  %1251 = vmatmul.mubr.bf16.gmra.mrb[0].mxu0 %v1216
  %v1252 = vpop.f32.mrb[0].mxu0
  %v1253 = vadd.f32 0.0, %v1252
  %v1254 = vpop.f32.mrb[0].mxu0
  %v1255 = vpop.f32.mrb[0].mxu0
  %v1256 = vadd.f32 0.0, %v1255
  %v1257 = vpop.f32.mrb[0].mxu0
  %1258 = vdwg.mxu0
  %v1259 = vadd.f32 %v1170, %v1253
  %v1260 = vadd.f32 %v1171, %v1256
  %1261 = vmatprep.subr.bf16.mxu0 0
  %1262 = vmatpush1.bf16.msra.mxu0 %v1213
  %1263 = vmatprep.subr.bf16.mxu0 0
  %1264 = vmatpush1.bf16.msra.mxu0 0
  %1265 = vmatprep.subr.bf16.mxu0 0
  %1266 = vmatpush1.bf16.msra.mxu0 0
  %1267 = vmatprep.subr.bf16.mxu0 0
  %1268 = vmatpush1.bf16.msra.mxu0 0
  %1269 = vmatprep.subr.bf16.mxu0 0
  %1270 = vmatpush1.bf16.msra.mxu0 0
  %1271 = vmatprep.subr.bf16.mxu0 0
  %1272 = vmatpush1.bf16.msra.mxu0 0
  %1273 = vmatprep.subr.bf16.mxu0 0
  %1274 = vmatpush1.bf16.msra.mxu0 0
  %1275 = vmatprep.subr.bf16.mxu0 0
  %1276 = vmatpush1.bf16.msra.mxu0 0
  %1277 = vmatprep.subr.bf16.mxu0 0
  %1278 = vmatpush1.bf16.msra.mxu0 0
  %1279 = vmatprep.subr.bf16.mxu0 0
  %1280 = vmatpush1.bf16.msra.mxu0 0
  %1281 = vmatprep.subr.bf16.mxu0 0
  %1282 = vmatpush1.bf16.msra.mxu0 0
  %1283 = vmatprep.subr.bf16.mxu0 0
  %1284 = vmatpush1.bf16.msra.mxu0 0
  %1285 = vmatprep.subr.bf16.mxu0 0
  %1286 = vmatpush1.bf16.msra.mxu0 0
  %1287 = vmatprep.subr.bf16.mxu0 0
  %1288 = vmatpush1.bf16.msra.mxu0 0
  %1289 = vmatprep.subr.bf16.mxu0 0
  %1290 = vmatpush1.bf16.msra.mxu0 0
  %1291 = vmatprep.subr.bf16.mxu0 0
  %1292 = vmatpush1.bf16.msra.mxu0 0
  %1293 = vmatprep.mubr.bf16.mxu0 0
  %1294 = vmatmul.mubr.bf16.gmra.mrb[0].mxu0 %v1216
  %v1295 = vpop.f32.mrb[0].mxu0
  %v1296 = vadd.f32 0.0, %v1295
  %v1297 = vpop.f32.mrb[0].mxu0
  %v1298 = vpop.f32.mrb[0].mxu0
  %v1299 = vadd.f32 0.0, %v1298
  %v1300 = vpop.f32.mrb[0].mxu0
  %1301 = vdwg.mxu0
  %v1302 = vpack.c.bf16 %v1299, %v1296
  %v1303 = vpack.c.bf16 %v1260, %v1259
  %v1305 = vsel %vm152, %v1302, 0
  %1307 = vmatprep.subr.bf16.mxu0 0
  %1308 = vmatpush1.bf16.msra.mxu0 %v1303
  %1309 = vmatprep.subr.bf16.mxu0 0
  %1310 = vmatpush1.bf16.msra.mxu0 0
  %1311 = vmatprep.subr.bf16.mxu0 0
  %1312 = vmatpush1.bf16.msra.mxu0 0
  %1313 = vmatprep.subr.bf16.mxu0 0
  %1314 = vmatpush1.bf16.msra.mxu0 0
  %1315 = vmatprep.subr.bf16.mxu0 0
  %1316 = vmatpush1.bf16.msra.mxu0 0
  %1317 = vmatprep.subr.bf16.mxu0 0
  %1318 = vmatpush1.bf16.msra.mxu0 0
  %1319 = vmatprep.subr.bf16.mxu0 0
  %1320 = vmatpush1.bf16.msra.mxu0 0
  %1321 = vmatprep.subr.bf16.mxu0 0
  %1322 = vmatpush1.bf16.msra.mxu0 0
  %1323 = vmatprep.subr.bf16.mxu0 0
  %1324 = vmatpush1.bf16.msra.mxu0 0
  %1325 = vmatprep.subr.bf16.mxu0 0
  %1326 = vmatpush1.bf16.msra.mxu0 0
  %1327 = vmatprep.subr.bf16.mxu0 0
  %1328 = vmatpush1.bf16.msra.mxu0 0
  %1329 = vmatprep.subr.bf16.mxu0 0
  %1330 = vmatpush1.bf16.msra.mxu0 0
  %1331 = vmatprep.subr.bf16.mxu0 0
  %1332 = vmatpush1.bf16.msra.mxu0 0
  %1333 = vmatprep.subr.bf16.mxu0 0
  %1334 = vmatpush1.bf16.msra.mxu0 0
  %1335 = vmatprep.subr.bf16.mxu0 0
  %1336 = vmatpush1.bf16.msra.mxu0 0
  %1337 = vmatprep.subr.bf16.mxu0 0
  %1338 = vmatpush1.bf16.msra.mxu0 0
  %1339 = vmatprep.mubr.bf16.mxu0 0
  %1340 = vmatmul.mubr.bf16.gmra.mrb[0].mxu0 %v1305
  %v1341 = vpop.f32.mrb[0].mxu0
  %v1342 = vadd.f32 0.0, %v1341
  %v1343 = vpop.f32.mrb[0].mxu0
  %v1344 = vpop.f32.mrb[0].mxu0
  %v1345 = vadd.f32 0.0, %v1344
  %v1346 = vpop.f32.mrb[0].mxu0
  %1347 = vdwg.mxu0
  %v1348 = vadd.f32 %v1259, %v1342
  %v1349 = vadd.f32 %v1260, %v1345
  %v1351 = vsel %vm152, %v941, 0
  %v1354 = vsel %vm152, %v942, 0
  %1356 = vmatprep.subr.mxu0 0.0
  %1357 = vmatpush1.msra.mxu0 %v1348
  %1358 = vmatprep.subr.mxu0 0.0
  %1359 = vmatpush1.msra.mxu0 %v1349
  %1360 = vmatprep.subr.mxu0 0.0
  %1361 = vmatpush1.msra.mxu0 0.0
  %1362 = vmatprep.subr.mxu0 0.0
  %1363 = vmatpush1.msra.mxu0 0.0
  %1364 = vmatprep.subr.mxu0 0.0
  %1365 = vmatpush1.msra.mxu0 0.0
  %1366 = vmatprep.subr.mxu0 0.0
  %1367 = vmatpush1.msra.mxu0 0.0
  %1368 = vmatprep.subr.mxu0 0.0
  %1369 = vmatpush1.msra.mxu0 0.0
  %1370 = vmatprep.subr.mxu0 0.0
  %1371 = vmatpush1.msra.mxu0 0.0
  %1372 = vmatprep.subr.mxu0 0.0
  %1373 = vmatpush1.msra.mxu0 0.0
  %1374 = vmatprep.subr.mxu0 0.0
  %1375 = vmatpush1.msra.mxu0 0.0
  %1376 = vmatprep.subr.mxu0 0.0
  %1377 = vmatpush1.msra.mxu0 0.0
  %1378 = vmatprep.subr.mxu0 0.0
  %1379 = vmatpush1.msra.mxu0 0.0
  %1380 = vmatprep.subr.mxu0 0.0
  %1381 = vmatpush1.msra.mxu0 0.0
  %1382 = vmatprep.subr.mxu0 0.0
  %1383 = vmatpush1.msra.mxu0 0.0
  %1384 = vmatprep.subr.mxu0 0.0
  %1385 = vmatpush1.msra.mxu0 0.0
  %1386 = vmatprep.subr.mxu0 0.0
  %1387 = vmatpush1.msra.mxu0 0.0
  %1388 = vmatprep.subr.mxu0 0.0
  %1389 = vmatpush1.msra.mxu0 0.0
  %1390 = vmatprep.subr.mxu0 0.0
  %1391 = vmatpush1.msra.mxu0 0.0
  %1392 = vmatprep.subr.mxu0 0.0
  %1393 = vmatpush1.msra.mxu0 0.0
  %1394 = vmatprep.subr.mxu0 0.0
  %1395 = vmatpush1.msra.mxu0 0.0
  %1396 = vmatprep.subr.mxu0 0.0
  %1397 = vmatpush1.msra.mxu0 0.0
  %1398 = vmatprep.subr.mxu0 0.0
  %1399 = vmatpush1.msra.mxu0 0.0
  %1400 = vmatprep.subr.mxu0 0.0
  %1401 = vmatpush1.msra.mxu0 0.0
  %1402 = vmatprep.subr.mxu0 0.0
  %1403 = vmatpush1.msra.mxu0 0.0
  %1404 = vmatprep.subr.mxu0 0.0
  %1405 = vmatpush1.msra.mxu0 0.0
  %1406 = vmatprep.subr.mxu0 0.0
  %1407 = vmatpush1.msra.mxu0 0.0
  %1408 = vmatprep.subr.mxu0 0.0
  %1409 = vmatpush1.msra.mxu0 0.0
  %1410 = vmatprep.subr.mxu0 0.0
  %1411 = vmatpush1.msra.mxu0 0.0
  %1412 = vmatprep.subr.mxu0 0.0
  %1413 = vmatpush1.msra.mxu0 0.0
  %1414 = vmatprep.subr.mxu0 0.0
  %1415 = vmatpush1.msra.mxu0 0.0
  %1416 = vmatprep.subr.mxu0 0.0
  %1417 = vmatpush1.msra.mxu0 0.0
  %1418 = vmatprep.subr.mxu0 0.0
  %1419 = vmatpush1.msra.mxu0 0.0
  %1420 = vmatprep.mubr.f32.mxu0 0.0
  %1421 = vmatmul.mubr.f32.gmra.mrb[0].mxu0 %v1351
  %v1422 = vpop.f32.mrb[0].mxu0
  %v1423 = vpop.f32.mrb[0].mxu0
  %1424 = vmatprep.mubr.f32.mxu0 0.0
  %1425 = vmatmul.mubr.f32.gmra.mrb[0].mxu0 %v1354
  %v1426 = vpop.f32.mrb[0].mxu0
  %v1427 = vadd.f32 0.0, %v1426
  %v1428 = vpop.f32.mrb[0].mxu0
  %1429 = vdwg.mxu0
  %v1430 = vadd.f32 %v945, %v1427
  %v1431 = vmul.f32 %v943, 0.5
  %v1432 = vmul.f32 %v1431, %v1430
  %v1433 = vadd.f32 %v1432, 1e-06
  %v1434 = vlog2.pop %v1433
  %v1435 = vmul.f32 %v1434, 0.6931472
  %vm1436 = vcmask 31744
  %1437 = vst.msk [vmem:[%s3] sm:$0xff] %vm1436, %v1435
  // Predicated region
  $region14: #{tpu_custom_call.1} parent=0 // pred_check
    _
  $region15: #{tpu_custom_call.1} parent=0 // pred_check_branch
    %1439 = sbr.rel (0) target = $region17
  $region16: #{tpu_custom_call.1} parent=0 // pred_region
    _
  $region17: #{tpu_custom_call.1} parent=0 // pred_fallthru
    _
  // Predicated region
  $region18: #{tpu_custom_call.1} parent=0 // pred_check
    _
  $region19: #{tpu_custom_call.1} parent=0 // pred_check_branch
    %1441 = sbr.rel (0) target = $region21
  $region20: #{tpu_custom_call.1} parent=0 // pred_region
    _
  $region21: #{tpu_custom_call.1} parent=0 // pred_fallthru
    _

</llo_original>
